<compile_context>
chip_gen: v6e
topology: v6e:2x2x1
jax: 0.10.0
libtpu: 0.0.40
codegen_flags: <defaults>
</compile_context>

<pallas_src>
import functools

import jax
import jax.numpy as jnp
from jax.experimental import pallas as pl
from jax.experimental.pallas import tpu as pltpu

HI = jax.lax.Precision.HIGHEST
LANE = 128

# Order of sections inside the packed f32 parameter slab.
F32_PARAM_ORDER = [
    "b_lstm", "gate_scale", "gate_add",
    "wqkv_t", "bqkv", "wo_t", "bo",
    "w1_t", "b1", "gamma", "beta",
    "w2_t", "b2", "seg", "seg_t",
]


def _sigmoid_ref(x):
    return 1.0 / (1.0 + jnp.exp(-x))


def _make_layout(H, NH, O):
    """Row layout of the packed f32 slab: name -> (row0, nrows, ncols)."""
    shapes = {
        "b_lstm": (1, 4 * H),
        "gate_scale": (1, 4 * H),
        "gate_add": (1, 4 * H),
        "wqkv_t": (H, 3 * H),
        "bqkv": (1, 3 * H),
        "wo_t": (H, H),
        "bo": (1, H),
        "w1_t": (H + 4, H),
        "b1": (1, H),
        "gamma": (1, H),
        "beta": (1, H),
        "w2_t": (H, O),
        "b2": (1, O),
        "seg": (H, NH),
        "seg_t": (NH, H),
    }
    layout = {}
    row = 0
    for name in F32_PARAM_ORDER:
        nr, nc = shapes[name]
        row = -(-row // 8) * 8          # align each section to a sublane tile
        layout[name] = (row, nr, nc)
        row += nr
    total = -(-row // 8) * 8
    return layout, total


def _pack_params(params, num_heads):
    """Pack all parameters into one bf16 slab + one lane-padded f32 slab."""
    D = params["w_ih_t"].shape[0]
    H = params["w_hh_t"].shape[0]
    O = params["w2_t"].shape[1]
    NH = num_heads

    # bf16 slab: recurrence weights only (pre-cast -> no in-kernel cast,
    # half the DMA bytes).
    wbf = jnp.concatenate([params["w_ih_t"], params["w_hh_t"]], axis=0)
    wbf = wbf.astype(jnp.bfloat16)                          # (D + H, 4H)
    if wbf.shape[1] < LANE:
        wbf = jnp.pad(wbf, ((0, 0), (0, LANE - wbf.shape[1])))

    # Constants precomputed once: gate masks for the single-tanh gate trick and
    # the lane<->head 0/1 segment matrices used by the attention stage.
    idx = jnp.arange(4 * H)
    is_g = (idx >= 2 * H) & (idx < 3 * H)
    gate_scale = jnp.where(is_g, 1.0, 0.5).astype(jnp.float32)[None, :]
    gate_add = jnp.where(is_g, 0.0, 0.5).astype(jnp.float32)[None, :]
    dh = H // NH
    seg = (jnp.arange(H)[:, None] // dh ==
           jnp.arange(NH)[None, :]).astype(jnp.float32)     # (H, NH)

    tensors = {
        "b_lstm": params["b_lstm"],
        "gate_scale": gate_scale,
        "gate_add": gate_add,
        "wqkv_t": jnp.concatenate(
            [params["wq_t"], params["wk_t"], params["wv_t"]], axis=1),
        "bqkv": jnp.concatenate(
            [params["bq"], params["bk"], params["bv"]], axis=1),
        "wo_t": params["wo_t"],
        "bo": params["bo"],
        "w1_t": params["w1_t"],
        "b1": params["b1"],
        "gamma": params["gamma"],
        "beta": params["beta"],
        "w2_t": params["w2_t"],
        "b2": params["b2"],
        "seg": seg,
        "seg_t": seg.T,
    }

    layout, total = _make_layout(H, NH, O)
    slab = jnp.zeros((total, LANE), jnp.float32)
    for name, (r0, nr, nc) in layout.items():
        slab = slab.at[r0:r0 + nr, 0:nc].set(tensors[name].astype(jnp.float32))
    return wbf, slab, layout


def _meanshark_kernel(xp_ref, xs_ref, wbf_ref, pp_ref, out_ref,
                      *, num_heads, H, layout):
    f32 = jnp.float32
    bf16 = jnp.bfloat16
    T, B, D = xp_ref.shape
    G = 4 * H

    def ld(name):
        r0, nr, nc = layout[name]
        return pp_ref[r0:r0 + nr, 0:nc]

    wih_bf = wbf_ref[0:D, 0:G]                   # (D, 4H) bf16
    whh_bf = wbf_ref[D:D + H, 0:G]               # (H, 4H) bf16

    b_lstm = ld("b_lstm")                        # (1, 4H)  b_ih + b_hh folded
    gate_scale = ld("gate_scale")                # (1, 4H): 1.0 on g lanes, 0.5 else
    gate_add = ld("gate_add")                    # (1, 4H): 0.0 on g lanes, 0.5 else

    # ---- hoisted input projection: one (T*B, D) x (D, 4H) bf16 MXU pass -----
    xp_flat = xp_ref[...].reshape(T * B, D).astype(bf16)
    xg_flat = jnp.dot(xp_flat, wih_bf, preferred_element_type=f32) + b_lstm   # (T*B, 4H)

    # ---- LSTM recurrence (PyTorch gate order i,f,g,o), fully unrolled -------
    # Only h @ W_hh (single-pass bf16 MXU) sits on the serial chain.  Gate
    # activations take ONE full-vreg tanh per step:
    #   sigmoid(x) = 0.5*(tanh(0.5x)+1)  on i,f,o lanes;  tanh(x) on g lanes.
    h = jnp.zeros((B, H), f32)
    c = jnp.zeros((B, H), f32)
    h_steps = []
    for t in range(T):
        gates = xg_flat[t * B:(t + 1) * B, :] + jnp.dot(
            h.astype(bf16), whh_bf, preferred_element_type=f32)               # (B, 4H)
        y = jnp.tanh(gates * gate_scale)                                      # one EUP pass
        act = gate_scale * y + gate_add                                       # exact recovery
        i_g = act[:, 0:H]
        f_g = act[:, H:2 * H]
        g_g = act[:, 2 * H:3 * H]
        o_g = act[:, 3 * H:4 * H]
        c = f_g * c + i_g * g_g
        h = o_g * jnp.tanh(c)
        h_steps.append(h)

    h_all = jnp.concatenate(h_steps, axis=0)                                  # (T*B, H)

    # ---- fused Q/K/V projection: ONE (T*B, H) x (H, 3H) matmul --------------
    qkv = jnp.dot(h_all, ld("wqkv_t"), preferred_element_type=f32) + ld("bqkv")
    q = qkv[(T - 1) * B:T * B, 0:H]              # (B, H) last-timestep query
    k = qkv[:, H:2 * H]                          # (T*B, H)
    v = qkv[:, 2 * H:3 * H]                      # (T*B, H)

    # ---- multi-head attention for the last query row, all heads at once -----
    dh = H // num_heads
    scale = 1.0 / (dh ** 0.5)
    seg = ld("seg")                              # (H, NH) 0/1 lane->head map
    seg_t = ld("seg_t")                          # (NH, H)
    qk = (k.reshape(T, B, H) * q[None, :, :]).reshape(T * B, H)   # no q tile
    scores = jnp.dot(qk, seg, preferred_element_type=f32) * scale             # (T*B, NH)
    scores = scores.reshape(T, B, num_heads)
    m = jnp.max(scores, axis=0, keepdims=True)
    p = jnp.exp(scores - m)
    w = p * pl.reciprocal(jnp.sum(p, axis=0, keepdims=True), approx=True)
    w_lane = jnp.dot(w.reshape(T * B, num_heads), seg_t,
                     preferred_element_type=f32)                              # (T*B, H)
    attn = jnp.sum((w_lane * v).reshape(T, B, H), axis=0)                     # (B, H)
    attn = jnp.dot(attn, ld("wo_t"), preferred_element_type=f32) + ld("bo")

    # ---- fc1 -> ReLU -> BatchNorm1d (batch stats) -> ReLU -> fc2 ------------
    # TODO(synk): eval-mode parity would need running_mean/running_var instead
    # of batch statistics (PyTorch training-mode semantics implemented here).
    combined = jnp.concatenate([attn, xs_ref[...]], axis=-1)                  # (B, H+4)
    z = jnp.dot(combined, ld("w1_t"), preferred_element_type=f32) + ld("b1")
    z = jnp.maximum(z, 0.0)
    mean = jnp.mean(z, axis=0, keepdims=True)
    var = jnp.mean((z - mean) ** 2, axis=0, keepdims=True)                    # biased var
    z = (z - mean) * jax.lax.rsqrt(var + 1e-5) * ld("gamma") + ld("beta")
    z = jnp.maximum(z, 0.0)
    # TODO(synk): at production widths pad the output to a lane-dense (>=128)
    # slab to avoid the masked vst on this (B, O) store.
    out_ref[...] = jnp.dot(z, ld("w2_t"), preferred_element_type=f32) + ld("b2")


def meanshark_forward(x_packets, x_stats, params, num_heads):
    """x_packets: (B, T, D) batch-first (PyTorch convention); x_stats: (B, 4)."""
    B, T, D = x_packets.shape
    H = params["w_hh_t"].shape[0]
    O = params["w2_t"].shape[1]

    wbf, slab, layout = _pack_params(params, num_heads)
    xp_tbd = jnp.transpose(x_packets, (1, 0, 2))   # time-major for the kernel

    # TODO(synk): for B >= 16 on v7x add a batch grid with
    # dimension_semantics=("parallel",) and a two-pass cross-core BatchNorm
    # reduction so both TensorCores take a batch shard.
    kernel = functools.partial(_meanshark_kernel, num_heads=num_heads, H=H,
                               layout=layout)
    return pl.pallas_call(
        kernel,
        out_shape=jax.ShapeDtypeStruct((B, O), jnp.float32),
        in_specs=[pl.BlockSpec(memory_space=pltpu.MemorySpace.VMEM)] * 4,
        out_specs=pl.BlockSpec(memory_space=pltpu.MemorySpace.VMEM),
    )(xp_tbd, x_stats, wbf, slab)


def reference_forward(x_packets, x_stats, p, num_heads):
    """Pure-JAX reference (f32 highest precision) mirroring the PyTorch forward."""
    B, T, D = x_packets.shape
    H = p["w_hh_t"].shape[0]

    def mm(a, b):
        return jnp.dot(a, b, precision=HI)

    h = jnp.zeros((B, H), jnp.float32)
    c = jnp.zeros((B, H), jnp.float32)
    hs = []
    for t in range(T):
        gates = mm(x_packets[:, t, :], p["w_ih_t"]) + mm(h, p["w_hh_t"]) + p["b_lstm"]
        i = _sigmoid_ref(gates[:, :H])
        f = _sigmoid_ref(gates[:, H:2 * H])
        g = jnp.tanh(gates[:, 2 * H:3 * H])
        o = _sigmoid_ref(gates[:, 3 * H:])
        c = f * c + i * g
        h = o * jnp.tanh(c)
        hs.append(h)
    lstm_out = jnp.stack(hs, axis=1)                                    # (B, T, H)
    q = mm(lstm_out[:, -1, :], p["wq_t"]) + p["bq"]
    k = jnp.einsum("bti,io->bto", lstm_out, p["wk_t"], precision=HI) + p["bk"]
    v = jnp.einsum("bti,io->bto", lstm_out, p["wv_t"], precision=HI) + p["bv"]
    dh = H // num_heads
    outs = []
    for hh in range(num_heads):
        sl = slice(hh * dh, (hh + 1) * dh)
        s = jnp.einsum("bd,btd->bt", q[:, sl], k[:, :, sl], precision=HI) / (dh ** 0.5)
        w = jax.nn.softmax(s, axis=-1)
        outs.append(jnp.einsum("bt,btd->bd", w, v[:, :, sl], precision=HI))
    attn = mm(jnp.concatenate(outs, axis=-1), p["wo_t"]) + p["bo"]
    combined = jnp.concatenate([attn, x_stats], axis=-1)
    z = jnp.maximum(mm(combined, p["w1_t"]) + p["b1"], 0.0)
    mean = z.mean(0, keepdims=True)
    var = ((z - mean) ** 2).mean(0, keepdims=True)
    z = (z - mean) * jax.lax.rsqrt(var + 1e-5) * p["gamma"] + p["beta"]
    z = jnp.maximum(z, 0.0)
    return mm(z, p["w2_t"]) + p["b2"]


def init_params(key, D, H, O):
    ks = jax.random.split(key, 16)
    s = 0.1
    p = {
        "w_ih_t": jax.random.normal(ks[0], (D, 4 * H)) * s,
        "w_hh_t": jax.random.normal(ks[1], (H, 4 * H)) * s,
        "b_lstm": jax.random.normal(ks[2], (1, 4 * H)) * s,   # b_ih + b_hh folded
        "wq_t": jax.random.normal(ks[3], (H, H)) * s,
        "wk_t": jax.random.normal(ks[4], (H, H)) * s,
        "wv_t": jax.random.normal(ks[5], (H, H)) * s,
        "bq": jax.random.normal(ks[6], (1, H)) * s,
        "bk": jax.random.normal(ks[7], (1, H)) * s,
        "bv": jax.random.normal(ks[8], (1, H)) * s,
        "wo_t": jax.random.normal(ks[9], (H, H)) * s,
        "bo": jax.random.normal(ks[10], (1, H)) * s,
        "w1_t": jax.random.normal(ks[11], (H + 4, H)) * s,
        "b1": jax.random.normal(ks[12], (1, H)) * s,
        "gamma": jnp.ones((1, H)),
        "beta": jnp.zeros((1, H)),
        "w2_t": jax.random.normal(ks[13], (H, O)) * s,
        "b2": jax.random.normal(ks[14], (1, O)) * s,
    }
    return jax.tree_util.tree_map(lambda a: a.astype(jnp.float32), p)


if __name__ == "__main__":
    # B padded to a full sublane (8) for vreg density.
    B, T, D, H, O, NH = 8, 8, 16, 32, 4, 4   # input_size=16, hidden=32, output=4, heads=4

    root = jax.random.PRNGKey(0)
    k_x, k_s, k_p = jax.random.split(root, 3)
    x_packets = jax.random.normal(k_x, (B, T, D), dtype=jnp.float32)
    x_stats = jax.random.normal(k_s, (B, 4), dtype=jnp.float32)
    params = init_params(k_p, D, H, O)

    out = jax.block_until_ready(meanshark_forward(x_packets, x_stats, params, NH))
    ref = reference_forward(x_packets, x_stats, params, NH)

    assert out.shape == (B, O), out.shape
    # The kernel runs the recurrence and the whole attention/MLP tail with
    # single-pass (bf16-accumulating-in-f32) MXU matmuls plus an approximate
    # softmax reciprocal; batch-stat BatchNorm amplifies small drifts by 1/std,
    # so compare against the f32-HIGHEST reference with a relaxed tolerance.
    assert jnp.allclose(out, ref, atol=2e-2, rtol=2e-2), (out, ref)

    print("KERNEL_OK")
</pallas_src>

<mosaic_0001>
module attributes {stable_mosaic.version = 11 : i64} {
  func.func @_meanshark_kernel(%arg0: memref<8x8x16xf32, #tpu.memory_space<vmem>>, %arg1: memref<8x4xf32, #tpu.memory_space<vmem>>, %arg2: memref<48x128xbf16, #tpu.memory_space<vmem>>, %arg3: memref<248x128xf32, #tpu.memory_space<vmem>>, %arg4: memref<8x4xf32, #tpu.memory_space<vmem>>) attributes {dimension_semantics = [], scalar_prefetch = 0 : i64, scratch_operands = 0 : i64, tpu.core_type = #tpu.core_type<tc>} {
    %c0 = arith.constant 0 : index
    %c0_0 = arith.constant 0 : index
    %0 = vector.load %arg2[%c0, %c0_0] : memref<48x128xbf16, #tpu.memory_space<vmem>>, vector<16x128xbf16>
    %c16 = arith.constant 16 : index
    %c0_1 = arith.constant 0 : index
    %1 = vector.load %arg2[%c16, %c0_1] : memref<48x128xbf16, #tpu.memory_space<vmem>>, vector<32x128xbf16>
    %c0_2 = arith.constant 0 : index
    %c0_3 = arith.constant 0 : index
    %2 = vector.load %arg3[%c0_2, %c0_3] : memref<248x128xf32, #tpu.memory_space<vmem>>, vector<1x128xf32>
    %c8 = arith.constant 8 : index
    %c0_4 = arith.constant 0 : index
    %3 = vector.load %arg3[%c8, %c0_4] : memref<248x128xf32, #tpu.memory_space<vmem>>, vector<1x128xf32>
    %c16_5 = arith.constant 16 : index
    %c0_6 = arith.constant 0 : index
    %4 = vector.load %arg3[%c16_5, %c0_6] : memref<248x128xf32, #tpu.memory_space<vmem>>, vector<1x128xf32>
    %c0_7 = arith.constant 0 : index
    %c0_8 = arith.constant 0 : index
    %c0_9 = arith.constant 0 : index
    %5 = vector.load %arg0[%c0_7, %c0_8, %c0_9] : memref<8x8x16xf32, #tpu.memory_space<vmem>>, vector<8x8x16xf32>
    %6 = vector.shape_cast %5 : vector<8x8x16xf32> to vector<64x16xf32>
    %7 = arith.truncf %6 : vector<64x16xf32> to vector<64x16xbf16>
    %cst = arith.constant dense<0.000000e+00> : vector<64x128xf32>
    %8 = tpu.matmul %7, %0, %cst {dimension_numbers = #tpu.dot_dimension_numbers<[1], [0], [0], [1], [0, 0, 1, 1], [], []>} : vector<64x16xbf16>, vector<16x128xbf16>, vector<64x128xf32> -> vector<64x128xf32>
    %9 = vector.broadcast %2 : vector<1x128xf32> to vector<64x128xf32>
    %10 = arith.addf %8, %9 : vector<64x128xf32>
    %cst_10 = arith.constant 0.000000e+00 : f32
    %11 = vector.broadcast %cst_10 : f32 to vector<8x32xf32>
    %cst_11 = arith.constant 0.000000e+00 : f32
    %12 = vector.broadcast %cst_11 : f32 to vector<8x32xf32>
    %13 = vector.extract_strided_slice %10 {offsets = [0, 0], sizes = [8, 128], strides = [1, 1]} : vector<64x128xf32> to vector<8x128xf32>
    %14 = arith.truncf %11 : vector<8x32xf32> to vector<8x32xbf16>
    %cst_12 = arith.constant dense<0.000000e+00> : vector<8x128xf32>
    %15 = tpu.matmul %14, %1, %cst_12 {dimension_numbers = #tpu.dot_dimension_numbers<[1], [0], [0], [1], [0, 0, 1, 1], [], []>} : vector<8x32xbf16>, vector<32x128xbf16>, vector<8x128xf32> -> vector<8x128xf32>
    %16 = arith.addf %13, %15 : vector<8x128xf32>
    %17 = vector.broadcast %3 : vector<1x128xf32> to vector<8x128xf32>
    %18 = arith.mulf %16, %17 : vector<8x128xf32>
    %19 = math.tanh %18 : vector<8x128xf32>
    %20 = vector.broadcast %3 : vector<1x128xf32> to vector<8x128xf32>
    %21 = arith.mulf %20, %19 : vector<8x128xf32>
    %22 = vector.broadcast %4 : vector<1x128xf32> to vector<8x128xf32>
    %23 = arith.addf %21, %22 : vector<8x128xf32>
    %24 = vector.extract_strided_slice %23 {offsets = [0, 0], sizes = [8, 32], strides = [1, 1]} : vector<8x128xf32> to vector<8x32xf32>
    %25 = vector.extract_strided_slice %23 {offsets = [0, 32], sizes = [8, 32], strides = [1, 1]} : vector<8x128xf32> to vector<8x32xf32>
    %26 = vector.extract_strided_slice %23 {offsets = [0, 64], sizes = [8, 32], strides = [1, 1]} : vector<8x128xf32> to vector<8x32xf32>
    %27 = vector.extract_strided_slice %23 {offsets = [0, 96], sizes = [8, 32], strides = [1, 1]} : vector<8x128xf32> to vector<8x32xf32>
    %28 = arith.mulf %25, %12 : vector<8x32xf32>
    %29 = arith.mulf %24, %26 : vector<8x32xf32>
    %30 = arith.addf %28, %29 : vector<8x32xf32>
    %31 = math.tanh %30 : vector<8x32xf32>
    %32 = arith.mulf %27, %31 : vector<8x32xf32>
    %33 = vector.extract_strided_slice %10 {offsets = [8, 0], sizes = [8, 128], strides = [1, 1]} : vector<64x128xf32> to vector<8x128xf32>
    %34 = arith.truncf %32 : vector<8x32xf32> to vector<8x32xbf16>
    %cst_13 = arith.constant dense<0.000000e+00> : vector<8x128xf32>
    %35 = tpu.matmul %34, %1, %cst_13 {dimension_numbers = #tpu.dot_dimension_numbers<[1], [0], [0], [1], [0, 0, 1, 1], [], []>} : vector<8x32xbf16>, vector<32x128xbf16>, vector<8x128xf32> -> vector<8x128xf32>
    %36 = arith.addf %33, %35 : vector<8x128xf32>
    %37 = vector.broadcast %3 : vector<1x128xf32> to vector<8x128xf32>
    %38 = arith.mulf %36, %37 : vector<8x128xf32>
    %39 = math.tanh %38 : vector<8x128xf32>
    %40 = vector.broadcast %3 : vector<1x128xf32> to vector<8x128xf32>
    %41 = arith.mulf %40, %39 : vector<8x128xf32>
    %42 = vector.broadcast %4 : vector<1x128xf32> to vector<8x128xf32>
    %43 = arith.addf %41, %42 : vector<8x128xf32>
    %44 = vector.extract_strided_slice %43 {offsets = [0, 0], sizes = [8, 32], strides = [1, 1]} : vector<8x128xf32> to vector<8x32xf32>
    %45 = vector.extract_strided_slice %43 {offsets = [0, 32], sizes = [8, 32], strides = [1, 1]} : vector<8x128xf32> to vector<8x32xf32>
    %46 = vector.extract_strided_slice %43 {offsets = [0, 64], sizes = [8, 32], strides = [1, 1]} : vector<8x128xf32> to vector<8x32xf32>
    %47 = vector.extract_strided_slice %43 {offsets = [0, 96], sizes = [8, 32], strides = [1, 1]} : vector<8x128xf32> to vector<8x32xf32>
    %48 = arith.mulf %45, %30 : vector<8x32xf32>
    %49 = arith.mulf %44, %46 : vector<8x32xf32>
    %50 = arith.addf %48, %49 : vector<8x32xf32>
    %51 = math.tanh %50 : vector<8x32xf32>
    %52 = arith.mulf %47, %51 : vector<8x32xf32>
    %53 = vector.extract_strided_slice %10 {offsets = [16, 0], sizes = [8, 128], strides = [1, 1]} : vector<64x128xf32> to vector<8x128xf32>
    %54 = arith.truncf %52 : vector<8x32xf32> to vector<8x32xbf16>
    %cst_14 = arith.constant dense<0.000000e+00> : vector<8x128xf32>
    %55 = tpu.matmul %54, %1, %cst_14 {dimension_numbers = #tpu.dot_dimension_numbers<[1], [0], [0], [1], [0, 0, 1, 1], [], []>} : vector<8x32xbf16>, vector<32x128xbf16>, vector<8x128xf32> -> vector<8x128xf32>
    %56 = arith.addf %53, %55 : vector<8x128xf32>
    %57 = vector.broadcast %3 : vector<1x128xf32> to vector<8x128xf32>
    %58 = arith.mulf %56, %57 : vector<8x128xf32>
    %59 = math.tanh %58 : vector<8x128xf32>
    %60 = vector.broadcast %3 : vector<1x128xf32> to vector<8x128xf32>
    %61 = arith.mulf %60, %59 : vector<8x128xf32>
    %62 = vector.broadcast %4 : vector<1x128xf32> to vector<8x128xf32>
    %63 = arith.addf %61, %62 : vector<8x128xf32>
    %64 = vector.extract_strided_slice %63 {offsets = [0, 0], sizes = [8, 32], strides = [1, 1]} : vector<8x128xf32> to vector<8x32xf32>
    %65 = vector.extract_strided_slice %63 {offsets = [0, 32], sizes = [8, 32], strides = [1, 1]} : vector<8x128xf32> to vector<8x32xf32>
    %66 = vector.extract_strided_slice %63 {offsets = [0, 64], sizes = [8, 32], strides = [1, 1]} : vector<8x128xf32> to vector<8x32xf32>
    %67 = vector.extract_strided_slice %63 {offsets = [0, 96], sizes = [8, 32], strides = [1, 1]} : vector<8x128xf32> to vector<8x32xf32>
    %68 = arith.mulf %65, %50 : vector<8x32xf32>
    %69 = arith.mulf %64, %66 : vector<8x32xf32>
    %70 = arith.addf %68, %69 : vector<8x32xf32>
    %71 = math.tanh %70 : vector<8x32xf32>
    %72 = arith.mulf %67, %71 : vector<8x32xf32>
    %73 = vector.extract_strided_slice %10 {offsets = [24, 0], sizes = [8, 128], strides = [1, 1]} : vector<64x128xf32> to vector<8x128xf32>
    %74 = arith.truncf %72 : vector<8x32xf32> to vector<8x32xbf16>
    %cst_15 = arith.constant dense<0.000000e+00> : vector<8x128xf32>
    %75 = tpu.matmul %74, %1, %cst_15 {dimension_numbers = #tpu.dot_dimension_numbers<[1], [0], [0], [1], [0, 0, 1, 1], [], []>} : vector<8x32xbf16>, vector<32x128xbf16>, vector<8x128xf32> -> vector<8x128xf32>
    %76 = arith.addf %73, %75 : vector<8x128xf32>
    %77 = vector.broadcast %3 : vector<1x128xf32> to vector<8x128xf32>
    %78 = arith.mulf %76, %77 : vector<8x128xf32>
    %79 = math.tanh %78 : vector<8x128xf32>
    %80 = vector.broadcast %3 : vector<1x128xf32> to vector<8x128xf32>
    %81 = arith.mulf %80, %79 : vector<8x128xf32>
    %82 = vector.broadcast %4 : vector<1x128xf32> to vector<8x128xf32>
    %83 = arith.addf %81, %82 : vector<8x128xf32>
    %84 = vector.extract_strided_slice %83 {offsets = [0, 0], sizes = [8, 32], strides = [1, 1]} : vector<8x128xf32> to vector<8x32xf32>
    %85 = vector.extract_strided_slice %83 {offsets = [0, 32], sizes = [8, 32], strides = [1, 1]} : vector<8x128xf32> to vector<8x32xf32>
    %86 = vector.extract_strided_slice %83 {offsets = [0, 64], sizes = [8, 32], strides = [1, 1]} : vector<8x128xf32> to vector<8x32xf32>
    %87 = vector.extract_strided_slice %83 {offsets = [0, 96], sizes = [8, 32], strides = [1, 1]} : vector<8x128xf32> to vector<8x32xf32>
    %88 = arith.mulf %85, %70 : vector<8x32xf32>
    %89 = arith.mulf %84, %86 : vector<8x32xf32>
    %90 = arith.addf %88, %89 : vector<8x32xf32>
    %91 = math.tanh %90 : vector<8x32xf32>
    %92 = arith.mulf %87, %91 : vector<8x32xf32>
    %93 = vector.extract_strided_slice %10 {offsets = [32, 0], sizes = [8, 128], strides = [1, 1]} : vector<64x128xf32> to vector<8x128xf32>
    %94 = arith.truncf %92 : vector<8x32xf32> to vector<8x32xbf16>
    %cst_16 = arith.constant dense<0.000000e+00> : vector<8x128xf32>
    %95 = tpu.matmul %94, %1, %cst_16 {dimension_numbers = #tpu.dot_dimension_numbers<[1], [0], [0], [1], [0, 0, 1, 1], [], []>} : vector<8x32xbf16>, vector<32x128xbf16>, vector<8x128xf32> -> vector<8x128xf32>
    %96 = arith.addf %93, %95 : vector<8x128xf32>
    %97 = vector.broadcast %3 : vector<1x128xf32> to vector<8x128xf32>
    %98 = arith.mulf %96, %97 : vector<8x128xf32>
    %99 = math.tanh %98 : vector<8x128xf32>
    %100 = vector.broadcast %3 : vector<1x128xf32> to vector<8x128xf32>
    %101 = arith.mulf %100, %99 : vector<8x128xf32>
    %102 = vector.broadcast %4 : vector<1x128xf32> to vector<8x128xf32>
    %103 = arith.addf %101, %102 : vector<8x128xf32>
    %104 = vector.extract_strided_slice %103 {offsets = [0, 0], sizes = [8, 32], strides = [1, 1]} : vector<8x128xf32> to vector<8x32xf32>
    %105 = vector.extract_strided_slice %103 {offsets = [0, 32], sizes = [8, 32], strides = [1, 1]} : vector<8x128xf32> to vector<8x32xf32>
    %106 = vector.extract_strided_slice %103 {offsets = [0, 64], sizes = [8, 32], strides = [1, 1]} : vector<8x128xf32> to vector<8x32xf32>
    %107 = vector.extract_strided_slice %103 {offsets = [0, 96], sizes = [8, 32], strides = [1, 1]} : vector<8x128xf32> to vector<8x32xf32>
    %108 = arith.mulf %105, %90 : vector<8x32xf32>
    %109 = arith.mulf %104, %106 : vector<8x32xf32>
    %110 = arith.addf %108, %109 : vector<8x32xf32>
    %111 = math.tanh %110 : vector<8x32xf32>
    %112 = arith.mulf %107, %111 : vector<8x32xf32>
    %113 = vector.extract_strided_slice %10 {offsets = [40, 0], sizes = [8, 128], strides = [1, 1]} : vector<64x128xf32> to vector<8x128xf32>
    %114 = arith.truncf %112 : vector<8x32xf32> to vector<8x32xbf16>
    %cst_17 = arith.constant dense<0.000000e+00> : vector<8x128xf32>
    %115 = tpu.matmul %114, %1, %cst_17 {dimension_numbers = #tpu.dot_dimension_numbers<[1], [0], [0], [1], [0, 0, 1, 1], [], []>} : vector<8x32xbf16>, vector<32x128xbf16>, vector<8x128xf32> -> vector<8x128xf32>
    %116 = arith.addf %113, %115 : vector<8x128xf32>
    %117 = vector.broadcast %3 : vector<1x128xf32> to vector<8x128xf32>
    %118 = arith.mulf %116, %117 : vector<8x128xf32>
    %119 = math.tanh %118 : vector<8x128xf32>
    %120 = vector.broadcast %3 : vector<1x128xf32> to vector<8x128xf32>
    %121 = arith.mulf %120, %119 : vector<8x128xf32>
    %122 = vector.broadcast %4 : vector<1x128xf32> to vector<8x128xf32>
    %123 = arith.addf %121, %122 : vector<8x128xf32>
    %124 = vector.extract_strided_slice %123 {offsets = [0, 0], sizes = [8, 32], strides = [1, 1]} : vector<8x128xf32> to vector<8x32xf32>
    %125 = vector.extract_strided_slice %123 {offsets = [0, 32], sizes = [8, 32], strides = [1, 1]} : vector<8x128xf32> to vector<8x32xf32>
    %126 = vector.extract_strided_slice %123 {offsets = [0, 64], sizes = [8, 32], strides = [1, 1]} : vector<8x128xf32> to vector<8x32xf32>
    %127 = vector.extract_strided_slice %123 {offsets = [0, 96], sizes = [8, 32], strides = [1, 1]} : vector<8x128xf32> to vector<8x32xf32>
    %128 = arith.mulf %125, %110 : vector<8x32xf32>
    %129 = arith.mulf %124, %126 : vector<8x32xf32>
    %130 = arith.addf %128, %129 : vector<8x32xf32>
    %131 = math.tanh %130 : vector<8x32xf32>
    %132 = arith.mulf %127, %131 : vector<8x32xf32>
    %133 = vector.extract_strided_slice %10 {offsets = [48, 0], sizes = [8, 128], strides = [1, 1]} : vector<64x128xf32> to vector<8x128xf32>
    %134 = arith.truncf %132 : vector<8x32xf32> to vector<8x32xbf16>
    %cst_18 = arith.constant dense<0.000000e+00> : vector<8x128xf32>
    %135 = tpu.matmul %134, %1, %cst_18 {dimension_numbers = #tpu.dot_dimension_numbers<[1], [0], [0], [1], [0, 0, 1, 1], [], []>} : vector<8x32xbf16>, vector<32x128xbf16>, vector<8x128xf32> -> vector<8x128xf32>
    %136 = arith.addf %133, %135 : vector<8x128xf32>
    %137 = vector.broadcast %3 : vector<1x128xf32> to vector<8x128xf32>
    %138 = arith.mulf %136, %137 : vector<8x128xf32>
    %139 = math.tanh %138 : vector<8x128xf32>
    %140 = vector.broadcast %3 : vector<1x128xf32> to vector<8x128xf32>
    %141 = arith.mulf %140, %139 : vector<8x128xf32>
    %142 = vector.broadcast %4 : vector<1x128xf32> to vector<8x128xf32>
    %143 = arith.addf %141, %142 : vector<8x128xf32>
    %144 = vector.extract_strided_slice %143 {offsets = [0, 0], sizes = [8, 32], strides = [1, 1]} : vector<8x128xf32> to vector<8x32xf32>
    %145 = vector.extract_strided_slice %143 {offsets = [0, 32], sizes = [8, 32], strides = [1, 1]} : vector<8x128xf32> to vector<8x32xf32>
    %146 = vector.extract_strided_slice %143 {offsets = [0, 64], sizes = [8, 32], strides = [1, 1]} : vector<8x128xf32> to vector<8x32xf32>
    %147 = vector.extract_strided_slice %143 {offsets = [0, 96], sizes = [8, 32], strides = [1, 1]} : vector<8x128xf32> to vector<8x32xf32>
    %148 = arith.mulf %145, %130 : vector<8x32xf32>
    %149 = arith.mulf %144, %146 : vector<8x32xf32>
    %150 = arith.addf %148, %149 : vector<8x32xf32>
    %151 = math.tanh %150 : vector<8x32xf32>
    %152 = arith.mulf %147, %151 : vector<8x32xf32>
    %153 = vector.extract_strided_slice %10 {offsets = [56, 0], sizes = [8, 128], strides = [1, 1]} : vector<64x128xf32> to vector<8x128xf32>
    %154 = arith.truncf %152 : vector<8x32xf32> to vector<8x32xbf16>
    %cst_19 = arith.constant dense<0.000000e+00> : vector<8x128xf32>
    %155 = tpu.matmul %154, %1, %cst_19 {dimension_numbers = #tpu.dot_dimension_numbers<[1], [0], [0], [1], [0, 0, 1, 1], [], []>} : vector<8x32xbf16>, vector<32x128xbf16>, vector<8x128xf32> -> vector<8x128xf32>
    %156 = arith.addf %153, %155 : vector<8x128xf32>
    %157 = vector.broadcast %3 : vector<1x128xf32> to vector<8x128xf32>
    %158 = arith.mulf %156, %157 : vector<8x128xf32>
    %159 = math.tanh %158 : vector<8x128xf32>
    %160 = vector.broadcast %3 : vector<1x128xf32> to vector<8x128xf32>
    %161 = arith.mulf %160, %159 : vector<8x128xf32>
    %162 = vector.broadcast %4 : vector<1x128xf32> to vector<8x128xf32>
    %163 = arith.addf %161, %162 : vector<8x128xf32>
    %164 = vector.extract_strided_slice %163 {offsets = [0, 0], sizes = [8, 32], strides = [1, 1]} : vector<8x128xf32> to vector<8x32xf32>
    %165 = vector.extract_strided_slice %163 {offsets = [0, 32], sizes = [8, 32], strides = [1, 1]} : vector<8x128xf32> to vector<8x32xf32>
    %166 = vector.extract_strided_slice %163 {offsets = [0, 64], sizes = [8, 32], strides = [1, 1]} : vector<8x128xf32> to vector<8x32xf32>
    %167 = vector.extract_strided_slice %163 {offsets = [0, 96], sizes = [8, 32], strides = [1, 1]} : vector<8x128xf32> to vector<8x32xf32>
    %168 = arith.mulf %165, %150 : vector<8x32xf32>
    %169 = arith.mulf %164, %166 : vector<8x32xf32>
    %170 = arith.addf %168, %169 : vector<8x32xf32>
    %171 = math.tanh %170 : vector<8x32xf32>
    %172 = arith.mulf %167, %171 : vector<8x32xf32>
    %173 = tpu.concatenate %32, %52, %72, %92, %112, %132, %152, %172 in 0 : vector<8x32xf32>, vector<8x32xf32>, vector<8x32xf32>, vector<8x32xf32>, vector<8x32xf32>, vector<8x32xf32>, vector<8x32xf32>, vector<8x32xf32> -> vector<64x32xf32>
    %c24 = arith.constant 24 : index
    %c0_20 = arith.constant 0 : index
    %174 = vector.load %arg3[%c24, %c0_20] : memref<248x128xf32, #tpu.memory_space<vmem>>, vector<32x96xf32>
    %cst_21 = arith.constant dense<0.000000e+00> : vector<64x96xf32>
    %175 = tpu.matmul %173, %174, %cst_21 {dimension_numbers = #tpu.dot_dimension_numbers<[1], [0], [0], [1], [0, 0, 1, 1], [], []>} : vector<64x32xf32>, vector<32x96xf32>, vector<64x96xf32> -> vector<64x96xf32>
    %c56 = arith.constant 56 : index
    %c0_22 = arith.constant 0 : index
    %176 = vector.load %arg3[%c56, %c0_22] : memref<248x128xf32, #tpu.memory_space<vmem>>, vector<1x96xf32>
    %177 = vector.broadcast %176 : vector<1x96xf32> to vector<64x96xf32>
    %178 = arith.addf %175, %177 : vector<64x96xf32>
    %179 = vector.extract_strided_slice %178 {offsets = [56, 0], sizes = [8, 32], strides = [1, 1]} : vector<64x96xf32> to vector<8x32xf32>
    %180 = vector.extract_strided_slice %178 {offsets = [0, 32], sizes = [64, 32], strides = [1, 1]} : vector<64x96xf32> to vector<64x32xf32>
    %181 = vector.extract_strided_slice %178 {offsets = [0, 64], sizes = [64, 32], strides = [1, 1]} : vector<64x96xf32> to vector<64x32xf32>
    %c208 = arith.constant 208 : index
    %c0_23 = arith.constant 0 : index
    %182 = vector.load %arg3[%c208, %c0_23] : memref<248x128xf32, #tpu.memory_space<vmem>>, vector<32x4xf32>
    %c240 = arith.constant 240 : index
    %c0_24 = arith.constant 0 : index
    %183 = vector.load %arg3[%c240, %c0_24] : memref<248x128xf32, #tpu.memory_space<vmem>>, vector<4x32xf32>
    %184 = vector.shape_cast %180 : vector<64x32xf32> to vector<8x8x32xf32>
    %185 = vector.shape_cast %179 : vector<8x32xf32> to vector<1x8x32xf32>
    %186 = vector.broadcast %185 : vector<1x8x32xf32> to vector<8x8x32xf32>
    %187 = arith.mulf %184, %186 : vector<8x8x32xf32>
    %188 = vector.shape_cast %187 : vector<8x8x32xf32> to vector<64x32xf32>
    %cst_25 = arith.constant dense<0.000000e+00> : vector<64x4xf32>
    %189 = tpu.matmul %188, %182, %cst_25 {dimension_numbers = #tpu.dot_dimension_numbers<[1], [0], [0], [1], [0, 0, 1, 1], [], []>} : vector<64x32xf32>, vector<32x4xf32>, vector<64x4xf32> -> vector<64x4xf32>
    %cst_26 = arith.constant 0.353553385 : f32
    %190 = vector.broadcast %cst_26 : f32 to vector<64x4xf32>
    %191 = arith.mulf %189, %190 : vector<64x4xf32>
    %192 = vector.shape_cast %191 : vector<64x4xf32> to vector<8x8x4xf32>
    %cst_27 = arith.constant dense<0xFF800000> : vector<8x4xf32>
    %193 = vector.multi_reduction <maximumf>, %192, %cst_27 [0] : vector<8x8x4xf32> to vector<8x4xf32>
    %194 = vector.shape_cast %193 : vector<8x4xf32> to vector<1x8x4xf32>
    %195 = vector.broadcast %194 : vector<1x8x4xf32> to vector<8x8x4xf32>
    %196 = arith.subf %192, %195 : vector<8x8x4xf32>
    %197 = math.exp %196 : vector<8x8x4xf32>
    %cst_28 = arith.constant dense<0.000000e+00> : vector<8x4xf32>
    %198 = vector.multi_reduction <add>, %197, %cst_28 [0] : vector<8x8x4xf32> to vector<8x4xf32>
    %199 = vector.shape_cast %198 : vector<8x4xf32> to vector<1x8x4xf32>
    %200 = tpu.reciprocal %199 {approx = true} : vector<1x8x4xf32> -> vector<1x8x4xf32>
    %201 = vector.broadcast %200 : vector<1x8x4xf32> to vector<8x8x4xf32>
    %202 = arith.mulf %197, %201 : vector<8x8x4xf32>
    %203 = vector.shape_cast %202 : vector<8x8x4xf32> to vector<64x4xf32>
    %cst_29 = arith.constant dense<0.000000e+00> : vector<64x32xf32>
    %204 = tpu.matmul %203, %183, %cst_29 {dimension_numbers = #tpu.dot_dimension_numbers<[1], [0], [0], [1], [0, 0, 1, 1], [], []>} : vector<64x4xf32>, vector<4x32xf32>, vector<64x32xf32> -> vector<64x32xf32>
    %205 = arith.mulf %204, %181 : vector<64x32xf32>
    %206 = vector.shape_cast %205 : vector<64x32xf32> to vector<8x8x32xf32>
    %cst_30 = arith.constant dense<0.000000e+00> : vector<8x32xf32>
    %207 = vector.multi_reduction <add>, %206, %cst_30 [0] : vector<8x8x32xf32> to vector<8x32xf32>
    %c64 = arith.constant 64 : index
    %c0_31 = arith.constant 0 : index
    %208 = vector.load %arg3[%c64, %c0_31] : memref<248x128xf32, #tpu.memory_space<vmem>>, vector<32x32xf32>
    %cst_32 = arith.constant dense<0.000000e+00> : vector<8x32xf32>
    %209 = tpu.matmul %207, %208, %cst_32 {dimension_numbers = #tpu.dot_dimension_numbers<[1], [0], [0], [1], [0, 0, 1, 1], [], []>} : vector<8x32xf32>, vector<32x32xf32>, vector<8x32xf32> -> vector<8x32xf32>
    %c96 = arith.constant 96 : index
    %c0_33 = arith.constant 0 : index
    %210 = vector.load %arg3[%c96, %c0_33] : memref<248x128xf32, #tpu.memory_space<vmem>>, vector<1x32xf32>
    %211 = vector.broadcast %210 : vector<1x32xf32> to vector<8x32xf32>
    %212 = arith.addf %209, %211 : vector<8x32xf32>
    %c0_34 = arith.constant 0 : index
    %c0_35 = arith.constant 0 : index
    %213 = vector.load %arg1[%c0_34, %c0_35] : memref<8x4xf32, #tpu.memory_space<vmem>>, vector<8x4xf32>
    %214 = tpu.concatenate %212, %213 in 1 : vector<8x32xf32>, vector<8x4xf32> -> vector<8x36xf32>
    %c104 = arith.constant 104 : index
    %c0_36 = arith.constant 0 : index
    %215 = vector.load %arg3[%c104, %c0_36] : memref<248x128xf32, #tpu.memory_space<vmem>>, vector<36x32xf32>
    %cst_37 = arith.constant dense<0.000000e+00> : vector<8x32xf32>
    %216 = tpu.matmul %214, %215, %cst_37 {dimension_numbers = #tpu.dot_dimension_numbers<[1], [0], [0], [1], [0, 0, 1, 1], [], []>} : vector<8x36xf32>, vector<36x32xf32>, vector<8x32xf32> -> vector<8x32xf32>
    %c144 = arith.constant 144 : index
    %c0_38 = arith.constant 0 : index
    %217 = vector.load %arg3[%c144, %c0_38] : memref<248x128xf32, #tpu.memory_space<vmem>>, vector<1x32xf32>
    %218 = vector.broadcast %217 : vector<1x32xf32> to vector<8x32xf32>
    %219 = arith.addf %216, %218 : vector<8x32xf32>
    %cst_39 = arith.constant 0.000000e+00 : f32
    %220 = vector.broadcast %cst_39 : f32 to vector<8x32xf32>
    %221 = arith.maximumf %219, %220 : vector<8x32xf32>
    %cst_40 = arith.constant dense<0.000000e+00> : vector<32xf32>
    %222 = vector.multi_reduction <add>, %221, %cst_40 [0] : vector<8x32xf32> to vector<32xf32>
    %223 = vector.shape_cast %222 : vector<32xf32> to vector<1x32xf32>
    %cst_41 = arith.constant 8.000000e+00 : f32
    %224 = vector.broadcast %cst_41 : f32 to vector<1x32xf32>
    %225 = arith.divf %223, %224 : vector<1x32xf32>
    %226 = vector.broadcast %225 : vector<1x32xf32> to vector<8x32xf32>
    %227 = arith.subf %221, %226 : vector<8x32xf32>
    %228 = arith.mulf %227, %227 : vector<8x32xf32>
    %cst_42 = arith.constant dense<0.000000e+00> : vector<32xf32>
    %229 = vector.multi_reduction <add>, %228, %cst_42 [0] : vector<8x32xf32> to vector<32xf32>
    %230 = vector.shape_cast %229 : vector<32xf32> to vector<1x32xf32>
    %cst_43 = arith.constant 8.000000e+00 : f32
    %231 = vector.broadcast %cst_43 : f32 to vector<1x32xf32>
    %232 = arith.divf %230, %231 : vector<1x32xf32>
    %233 = vector.broadcast %225 : vector<1x32xf32> to vector<8x32xf32>
    %234 = arith.subf %221, %233 : vector<8x32xf32>
    %cst_44 = arith.constant 9.99999974E-6 : f32
    %235 = vector.broadcast %cst_44 : f32 to vector<1x32xf32>
    %236 = arith.addf %232, %235 : vector<1x32xf32>
    %237 = math.rsqrt %236 : vector<1x32xf32>
    %238 = vector.broadcast %237 : vector<1x32xf32> to vector<8x32xf32>
    %239 = arith.mulf %234, %238 : vector<8x32xf32>
    %c152 = arith.constant 152 : index
    %c0_45 = arith.constant 0 : index
    %240 = vector.load %arg3[%c152, %c0_45] : memref<248x128xf32, #tpu.memory_space<vmem>>, vector<1x32xf32>
    %241 = vector.broadcast %240 : vector<1x32xf32> to vector<8x32xf32>
    %242 = arith.mulf %239, %241 : vector<8x32xf32>
    %c160 = arith.constant 160 : index
    %c0_46 = arith.constant 0 : index
    %243 = vector.load %arg3[%c160, %c0_46] : memref<248x128xf32, #tpu.memory_space<vmem>>, vector<1x32xf32>
    %244 = vector.broadcast %243 : vector<1x32xf32> to vector<8x32xf32>
    %245 = arith.addf %242, %244 : vector<8x32xf32>
    %cst_47 = arith.constant 0.000000e+00 : f32
    %246 = vector.broadcast %cst_47 : f32 to vector<8x32xf32>
    %247 = arith.maximumf %245, %246 : vector<8x32xf32>
    %c168 = arith.constant 168 : index
    %c0_48 = arith.constant 0 : index
    %248 = vector.load %arg3[%c168, %c0_48] : memref<248x128xf32, #tpu.memory_space<vmem>>, vector<32x4xf32>
    %cst_49 = arith.constant dense<0.000000e+00> : vector<8x4xf32>
    %249 = tpu.matmul %247, %248, %cst_49 {dimension_numbers = #tpu.dot_dimension_numbers<[1], [0], [0], [1], [0, 0, 1, 1], [], []>} : vector<8x32xf32>, vector<32x4xf32>, vector<8x4xf32> -> vector<8x4xf32>
    %c200 = arith.constant 200 : index
    %c0_50 = arith.constant 0 : index
    %250 = vector.load %arg3[%c200, %c0_50] : memref<248x128xf32, #tpu.memory_space<vmem>>, vector<1x4xf32>
    %251 = vector.broadcast %250 : vector<1x4xf32> to vector<8x4xf32>
    %252 = arith.addf %249, %251 : vector<8x4xf32>
    %c0_51 = arith.constant 0 : index
    %c0_52 = arith.constant 0 : index
    %253 = vector.load %arg4[%c0_51, %c0_52] : memref<8x4xf32, #tpu.memory_space<vmem>>, vector<8x4xf32>
    tpu.vector_store %arg4[%c0_51, %c0_52], %252 {strides = array<i32>} : memref<8x4xf32, #tpu.memory_space<vmem>>, vector<8x4xf32>,
    return
  }
}

</mosaic_0001>

<llo_original>
// kernel: tpu_custom_call.1
$region0: #{tpu_custom_call.1}
  #allocation0 [shape = 'u32[]', space=smem, size = 0x4, offset = 0x4, fixed_abs, tag = 'smem constant byte address 0x4 - core index']
  #allocation1 [shape = 'u32[144,128]{1,0:T(1,128)}', space=vmem, size = 0x12000, scoped, tag = 'internal scratch']
  %s0 = inlined_call_operand.hbm [shape: f32[8,8,16], index: 0, kind: input, shape index: {}]
  %s1 = inlined_call_operand.vmem [shape: f32[8,4], index: 1, kind: input, shape index: {}]
  %s2 = inlined_call_operand.hbm [shape: bf16[48,128], index: 2, kind: input, shape index: {}]
  %s3 = inlined_call_operand.hbm [shape: f32[248,128], index: 3, kind: input, shape index: {}]
  %s4 = inlined_call_operand.vmem [shape: f32[8,4], index: 4, kind: output, shape index: {}]
  %s5 = sld [smem:[#allocation0]]
  $region38: #{tpu_custom_call.1} parent=0
    _
  %s7 = ssub.s32 1, %s5
  %s8 = scalar_select 0, %s7, %s5
  $region1: #{tpu_custom_call.1} parent=0
    #allocation2 [shape = 'u8[32768]{0}', space=vmem, size = 0x8000, scoped, tag = 'input window, operand 0, single buffered']
    #allocation3 [shape = 's32[1]{0}', space=sflag, size = 0x4, scoped, tag = 'scoped memory for tpu_custom_call.1']
    #allocation4 [shape = 'u8[12288]{0}', space=vmem, size = 0x3000, scoped, tag = 'input window, operand 2, single buffered']
    #allocation5 [shape = 's32[1]{0}', space=sflag, size = 0x4, scoped, tag = 'scoped memory for tpu_custom_call.1']
    #allocation6 [shape = 'u8[126976]{0}', space=vmem, size = 0x1f000, scoped, tag = 'input window, operand 3, single buffered']
    %9 = vsyncpa [#allocation3], 0
    %10 = vsyncpa [#allocation5], 0
    // Predicated region
    $region2: #{tpu_custom_call.1} parent=1 // pred_check
      _
    $region3: #{tpu_custom_call.1} parent=1 // pred_check_branch
      %12 = sbr.rel (0) target = $region5
    $region4: #{tpu_custom_call.1} parent=1 // pred_region
      %s14 = ssub.s32 1024, 1024
      %15 = vsyncadd [#allocation3], %s14
      %s16 = sshll.u32 [#allocation2], 4
      %s17 = int_to_ptr.vmem [resolvable:$true] %s16
      %22 = dma.hbm_to_vmem [thread:$0]  %s0, 1024, %s17, [#allocation3], 128, 128, 8
    $region5: #{tpu_custom_call.1} parent=1 // pred_fallthru
      _
    // Predicated region
    $region6: #{tpu_custom_call.1} parent=1 // pred_check
      _
    $region7: #{tpu_custom_call.1} parent=1 // pred_check_branch
      %24 = sbr.rel (0) target = $region9
    $region8: #{tpu_custom_call.1} parent=1 // pred_region
      _
    $region9: #{tpu_custom_call.1} parent=1 // pred_fallthru
      _
    // Predicated region
    $region10: #{tpu_custom_call.1} parent=1 // pred_check
      _
    $region11: #{tpu_custom_call.1} parent=1 // pred_check_branch
      %26 = sbr.rel (0) target = $region13
    $region12: #{tpu_custom_call.1} parent=1 // pred_region
      %s28 = ssub.s32 384, 384
      %29 = vsyncadd [#allocation5], %s28
      %s30 = sshll.u32 [#allocation4], 4
      %s31 = int_to_ptr.vmem [resolvable:$true] %s30
      %36 = dma.hbm_to_vmem [thread:$0]  %s2, 384, %s31, [#allocation5], 64, 64, 4
    $region13: #{tpu_custom_call.1} parent=1 // pred_fallthru
      _
    // Predicated region
    $region14: #{tpu_custom_call.1} parent=1 // pred_check
      _
    $region15: #{tpu_custom_call.1} parent=1 // pred_check_branch
      %38 = sbr.rel (0) target = $region17
    $region16: #{tpu_custom_call.1} parent=1 // pred_region
      %s40 = ssub.s32 3968, 3968
      %41 = vsyncadd [#allocation5], %s40
      %s42 = sshll.u32 [#allocation6], 4
      %s43 = int_to_ptr.vmem [resolvable:$true] %s42
      %48 = dma.hbm_to_vmem [thread:$0]  %s3, 3968, %s43, [#allocation5], 128, 128, 8
    $region17: #{tpu_custom_call.1} parent=1 // pred_fallthru
      _
    // Predicated region
    $region18: #{tpu_custom_call.1} parent=1 // pred_check
      _
    $region19: #{tpu_custom_call.1} parent=1 // pred_check_branch
      %50 = sbr.rel (0) target = $region21
    $region20: #{tpu_custom_call.1} parent=1 // pred_region
      %51 = dma.done [#allocation3], 1024
    $region21: #{tpu_custom_call.1} parent=1 // pred_fallthru
      _
    // Predicated region
    $region22: #{tpu_custom_call.1} parent=1 // pred_check
      _
    $region23: #{tpu_custom_call.1} parent=1 // pred_check_branch
      %53 = sbr.rel (0) target = $region25
    $region24: #{tpu_custom_call.1} parent=1 // pred_region
      %54 = dma.done [#allocation5], 384
    $region25: #{tpu_custom_call.1} parent=1 // pred_fallthru
      _
    // Predicated region
    $region26: #{tpu_custom_call.1} parent=1 // pred_check
      _
    $region27: #{tpu_custom_call.1} parent=1 // pred_check_branch
      %56 = sbr.rel (0) target = $region29
    $region28: #{tpu_custom_call.1} parent=1 // pred_region
      %57 = dma.done [#allocation5], 3968
    $region29: #{tpu_custom_call.1} parent=1 // pred_fallthru
      _
    %v59 = vld [vmem:[#allocation4] sm:$0xf]
    %v60 = vld [vmem:[#allocation4 + $0x4] sm:$0xf]
    %v61 = vld [vmem:[#allocation4 + $0x8] sm:$0xf]
    %v62 = vld [vmem:[#allocation4 + $0xc] sm:$0xf]
    %v63 = vld [vmem:[#allocation4 + $0x10] sm:$0xf]
    %v64 = vld [vmem:[#allocation4 + $0x14] sm:$0xf]
    %v65 = vld [vmem:[#allocation6] sm:$0x1]
    %v66 = vld [vmem:[#allocation6 + $0x8] sm:$0x1]
    %v67 = vld [vmem:[#allocation6 + $0x10] sm:$0x1]
    %v68 = vld [vmem:[#allocation2] sm:$0xff]
    %v69 = vld [vmem:[#allocation2 + $0x8] sm:$0xff]
    %v70 = vld [vmem:[#allocation2 + $0x10] sm:$0xff]
    %v71 = vld [vmem:[#allocation2 + $0x18] sm:$0xff]
    %v72 = vld [vmem:[#allocation2 + $0x20] sm:$0xff]
    %v73 = vld [vmem:[#allocation2 + $0x28] sm:$0xff]
    %v74 = vld [vmem:[#allocation2 + $0x30] sm:$0xff]
    %v75 = vld [vmem:[#allocation2 + $0x38] sm:$0xff]
    %v76 = vpack.c.bf16 %v69, %v68
    %v77 = vpack.c.bf16 %v71, %v70
    %v78 = vpack.c.bf16 %v73, %v72
    %v79 = vpack.c.bf16 %v75, %v74
    %v80 = vlaneseq
    %v81 = vshrl.u32 %v80, 7
    %v82 = vsub.s32 0, %v81
    %v83 = vrot.slane %v65, %v82
    %v86 = vunpack.c.l.b16 %v59
    %v87 = vunpack.c.l.b16 %v60
    %v88 = vpack.c.b16 %v87, %v86
    %vm90 = vcmask 130048
    %v92 = vsel %vm90, %v76, 0
    %v95 = vsel %vm90, %v77, 0
    %v98 = vsel %vm90, %v78, 0
    %v101 = vsel %vm90, %v79, 0
    %103 = vmatprep.subr.bf16.mxu0 0
    %104 = vmatpush1.bf16.msra.mxu0 0
    %105 = vmatprep.subr.bf16.mxu0 0
    %106 = vmatpush1.bf16.msra.mxu0 0
    %107 = vmatprep.subr.bf16.mxu0 0
    %108 = vmatpush1.bf16.msra.mxu0 0
    %109 = vmatprep.subr.bf16.mxu0 0
    %110 = vmatpush1.bf16.msra.mxu0 0
    %111 = vmatprep.subr.bf16.mxu0 0
    %112 = vmatpush1.bf16.msra.mxu0 0
    %113 = vmatprep.subr.bf16.mxu0 0
    %114 = vmatpush1.bf16.msra.mxu0 0
    %115 = vmatprep.subr.bf16.mxu0 0
    %116 = vmatpush1.bf16.msra.mxu0 0
    %117 = vmatprep.subr.bf16.mxu0 0
    %118 = vmatpush1.bf16.msra.mxu0 %v88
    %119 = vmatprep.subr.bf16.mxu0 0
    %120 = vmatpush2.bf16.msra.mxu0 0
    %121 = vmatprep.subr.bf16.mxu0 0
    %122 = vmatpush2.bf16.msra.mxu0 0
    %123 = vmatprep.subr.bf16.mxu0 0
    %124 = vmatpush2.bf16.msra.mxu0 0
    %125 = vmatprep.subr.bf16.mxu0 0
    %126 = vmatpush2.bf16.msra.mxu0 0
    %127 = vmatprep.subr.bf16.mxu0 0
    %128 = vmatpush2.bf16.msra.mxu0 0
    %129 = vmatprep.subr.bf16.mxu0 0
    %130 = vmatpush2.bf16.msra.mxu0 0
    %131 = vmatprep.subr.bf16.mxu0 0
    %132 = vmatpush2.bf16.msra.mxu0 0
    %133 = vmatprep.subr.bf16.mxu0 0
    %134 = vmatpush2.bf16.msra.mxu0 0
    %135 = vmatprep.mubr.bf16.mxu0 0
    %136 = vmatmul.mubr.bf16.gmra.mxu0 %v92
    %v137 = vpop.f32.mrf.mxu0
    %v138 = vadd.f32 %v83, %v137
    %v139 = vpop.f32.mrf.mxu0
    %v140 = vpop.f32.mrf.mxu0
    %v141 = vadd.f32 %v83, %v140
    %v142 = vpop.f32.mrf.mxu0
    %143 = vmatprep.mubr.bf16.mxu0 0
    %144 = vmatmul.mubr.bf16.gmra.mxu0 %v95
    %v145 = vpop.f32.mrf.mxu0
    %v146 = vadd.f32 %v83, %v145
    %v147 = vpop.f32.mrf.mxu0
    %v148 = vpop.f32.mrf.mxu0
    %v149 = vadd.f32 %v83, %v148
    %v150 = vpop.f32.mrf.mxu0
    %151 = vmatprep.mubr.bf16.mxu0 0
    %152 = vmatmul.mubr.bf16.gmra.mxu0 %v98
    %v153 = vpop.f32.mrf.mxu0
    %v154 = vadd.f32 %v83, %v153
    %v155 = vpop.f32.mrf.mxu0
    %v156 = vpop.f32.mrf.mxu0
    %v157 = vadd.f32 %v83, %v156
    %v158 = vpop.f32.mrf.mxu0
    %159 = vmatprep.mubr.bf16.mxu0 0
    %160 = vmatmul.mubr.bf16.gmra.mxu0 %v101
    %v161 = vpop.f32.mrf.mxu0
    %v162 = vadd.f32 %v83, %v161
    %v163 = vpop.f32.mrf.mxu0
    %v164 = vpop.f32.mrf.mxu0
    %v165 = vadd.f32 %v83, %v164
    %v166 = vpop.f32.mrf.mxu0
    %167 = vdwg.mxu0
    %v172 = vunpack.c.l.b16 %v61
    %v173 = vunpack.c.l.b16 %v62
    %v174 = vunpack.c.l.b16 %v63
    %v175 = vunpack.c.l.b16 %v64
    %v176 = vpack.c.b16 %v173, %v172
    %v177 = vpack.c.b16 %v175, %v174
    %vm180 = vcmask 261120
    %v182 = vsel %vm180, 0, 0
    %184 = vmatprep.subr.bf16.mxu0 0
    %185 = vmatpush1.bf16.msra.mxu0 0
    %186 = vmatprep.subr.bf16.mxu0 0
    %187 = vmatpush1.bf16.msra.mxu0 0
    %188 = vmatprep.subr.bf16.mxu0 0
    %189 = vmatpush1.bf16.msra.mxu0 0
    %190 = vmatprep.subr.bf16.mxu0 0
    %191 = vmatpush1.bf16.msra.mxu0 0
    %192 = vmatprep.subr.bf16.mxu0 0
    %193 = vmatpush1.bf16.msra.mxu0 0
    %194 = vmatprep.subr.bf16.mxu0 0
    %195 = vmatpush1.bf16.msra.mxu0 0
    %196 = vmatprep.subr.bf16.mxu0 0
    %197 = vmatpush1.bf16.msra.mxu0 %v177
    %198 = vmatprep.subr.bf16.mxu0 0
    %199 = vmatpush1.bf16.msra.mxu0 %v176
    %200 = vmatprep.subr.bf16.mxu0 0
    %201 = vmatpush2.bf16.msra.mxu0 0
    %202 = vmatprep.subr.bf16.mxu0 0
    %203 = vmatpush2.bf16.msra.mxu0 0
    %204 = vmatprep.subr.bf16.mxu0 0
    %205 = vmatpush2.bf16.msra.mxu0 0
    %206 = vmatprep.subr.bf16.mxu0 0
    %207 = vmatpush2.bf16.msra.mxu0 0
    %208 = vmatprep.subr.bf16.mxu0 0
    %209 = vmatpush2.bf16.msra.mxu0 0
    %210 = vmatprep.subr.bf16.mxu0 0
    %211 = vmatpush2.bf16.msra.mxu0 0
    %212 = vmatprep.subr.bf16.mxu0 0
    %213 = vmatpush2.bf16.msra.mxu0 0
    %214 = vmatprep.subr.bf16.mxu0 0
    %215 = vmatpush2.bf16.msra.mxu0 0
    %216 = vmatprep.mubr.bf16.mxu0 0
    %217 = vmatmul.mubr.bf16.gmra.mxu0 %v182
    %v218 = vpop.f32.mrf.mxu0
    %v219 = vadd.f32 0.0, %v218
    %v220 = vpop.f32.mrf.mxu0
    %v221 = vpop.f32.mrf.mxu0
    %v222 = vpop.f32.mrf.mxu0
    %223 = vdwg.mxu0
    %v224 = vadd.f32 %v138, %v219
    %v225 = vlaneseq
    %v226 = vshrl.u32 %v225, 7
    %v227 = vsub.s32 0, %v226
    %v228 = vrot.slane %v66, %v227
    %v229 = vmul.f32 %v224, %v228
    %v230 = vtanh.pop %v229
    %v231 = vmul.f32 %v228, %v230
    %v232 = vlaneseq
    %v233 = vshrl.u32 %v232, 7
    %v234 = vsub.s32 0, %v233
    %v235 = vrot.slane %v67, %v234
    %v236 = vadd.f32 %v231, %v235
    %v237 = vmul.f32 %v236, 0.0
    %239 = vrot.lane.b32.xlu0 %v236, 64
    %v240 = vpop.permute.xlu0 %239
    %v242 = vmul.f32 %v236, %v240
    %244 = vrot.lane.b32.xlu0 %v242, 32
    %v245 = vpop.permute.xlu0 %244
    %v247 = vadd.f32 %v237, %v245
    %v248 = vtanh.pop %v247
    %250 = vrot.lane.b32.xlu0 %v248, 64
    %v251 = vpop.permute.xlu0 %250
    %v253 = vmul.f32 %v236, %v251
    %v254 = vpack.c.bf16 %v253, %v253
    %256 = vrot.lane.b32.xlu0 %v254, 32
    %v257 = vpop.permute.xlu0 %256
    %v259 = vsel %vm180, %v257, 0
    %261 = vmatprep.subr.bf16.mxu0 0
    %262 = vmatpush1.bf16.msra.mxu0 0
    %263 = vmatprep.subr.bf16.mxu0 0
    %264 = vmatpush1.bf16.msra.mxu0 0
    %265 = vmatprep.subr.bf16.mxu0 0
    %266 = vmatpush1.bf16.msra.mxu0 0
    %267 = vmatprep.subr.bf16.mxu0 0
    %268 = vmatpush1.bf16.msra.mxu0 0
    %269 = vmatprep.subr.bf16.mxu0 0
    %270 = vmatpush1.bf16.msra.mxu0 0
    %271 = vmatprep.subr.bf16.mxu0 0
    %272 = vmatpush1.bf16.msra.mxu0 0
    %273 = vmatprep.subr.bf16.mxu0 0
    %274 = vmatpush1.bf16.msra.mxu0 %v177
    %275 = vmatprep.subr.bf16.mxu0 0
    %276 = vmatpush1.bf16.msra.mxu0 %v176
    %277 = vmatprep.subr.bf16.mxu0 0
    %278 = vmatpush2.bf16.msra.mxu0 0
    %279 = vmatprep.subr.bf16.mxu0 0
    %280 = vmatpush2.bf16.msra.mxu0 0
    %281 = vmatprep.subr.bf16.mxu0 0
    %282 = vmatpush2.bf16.msra.mxu0 0
    %283 = vmatprep.subr.bf16.mxu0 0
    %284 = vmatpush2.bf16.msra.mxu0 0
    %285 = vmatprep.subr.bf16.mxu0 0
    %286 = vmatpush2.bf16.msra.mxu0 0
    %287 = vmatprep.subr.bf16.mxu0 0
    %288 = vmatpush2.bf16.msra.mxu0 0
    %289 = vmatprep.subr.bf16.mxu0 0
    %290 = vmatpush2.bf16.msra.mxu0 0
    %291 = vmatprep.subr.bf16.mxu0 0
    %292 = vmatpush2.bf16.msra.mxu0 0
    %293 = vmatprep.mubr.bf16.mxu0 0
    %294 = vmatmul.mubr.bf16.gmra.mxu0 %v259
    %v295 = vpop.f32.mrf.mxu0
    %v296 = vadd.f32 0.0, %v295
    %v297 = vpop.f32.mrf.mxu0
    %v298 = vpop.f32.mrf.mxu0
    %v299 = vpop.f32.mrf.mxu0
    %300 = vdwg.mxu0
    %v301 = vadd.f32 %v141, %v296
    %v302 = vmul.f32 %v301, %v228
    %v303 = vtanh.pop %v302
    %v304 = vmul.f32 %v228, %v303
    %v305 = vadd.f32 %v304, %v235
    %v306 = vmul.f32 %v305, %v247
    %308 = vrot.lane.b32.xlu0 %v305, 64
    %v309 = vpop.permute.xlu0 %308
    %v311 = vmul.f32 %v305, %v309
    %313 = vrot.lane.b32.xlu0 %v311, 32
    %v314 = vpop.permute.xlu0 %313
    %v316 = vadd.f32 %v306, %v314
    %v317 = vtanh.pop %v316
    %319 = vrot.lane.b32.xlu0 %v317, 64
    %v320 = vpop.permute.xlu0 %319
    %v322 = vmul.f32 %v305, %v320
    %v323 = vpack.c.bf16 %v322, %v322
    %325 = vrot.lane.b32.xlu0 %v323, 32
    %v326 = vpop.permute.xlu0 %325
    %v328 = vsel %vm180, %v326, 0
    %330 = vmatprep.subr.bf16.mxu0 0
    %331 = vmatpush1.bf16.msra.mxu0 0
    %332 = vmatprep.subr.bf16.mxu0 0
    %333 = vmatpush1.bf16.msra.mxu0 0
    %334 = vmatprep.subr.bf16.mxu0 0
    %335 = vmatpush1.bf16.msra.mxu0 0
    %336 = vmatprep.subr.bf16.mxu0 0
    %337 = vmatpush1.bf16.msra.mxu0 0
    %338 = vmatprep.subr.bf16.mxu0 0
    %339 = vmatpush1.bf16.msra.mxu0 0
    %340 = vmatprep.subr.bf16.mxu0 0
    %341 = vmatpush1.bf16.msra.mxu0 0
    %342 = vmatprep.subr.bf16.mxu0 0
    %343 = vmatpush1.bf16.msra.mxu0 %v177
    %344 = vmatprep.subr.bf16.mxu0 0
    %345 = vmatpush1.bf16.msra.mxu0 %v176
    %346 = vmatprep.subr.bf16.mxu0 0
    %347 = vmatpush2.bf16.msra.mxu0 0
    %348 = vmatprep.subr.bf16.mxu0 0
    %349 = vmatpush2.bf16.msra.mxu0 0
    %350 = vmatprep.subr.bf16.mxu0 0
    %351 = vmatpush2.bf16.msra.mxu0 0
    %352 = vmatprep.subr.bf16.mxu0 0
    %353 = vmatpush2.bf16.msra.mxu0 0
    %354 = vmatprep.subr.bf16.mxu0 0
    %355 = vmatpush2.bf16.msra.mxu0 0
    %356 = vmatprep.subr.bf16.mxu0 0
    %357 = vmatpush2.bf16.msra.mxu0 0
    %358 = vmatprep.subr.bf16.mxu0 0
    %359 = vmatpush2.bf16.msra.mxu0 0
    %360 = vmatprep.subr.bf16.mxu0 0
    %361 = vmatpush2.bf16.msra.mxu0 0
    %362 = vmatprep.mubr.bf16.mxu0 0
    %363 = vmatmul.mubr.bf16.gmra.mxu0 %v328
    %v364 = vpop.f32.mrf.mxu0
    %v365 = vadd.f32 0.0, %v364
    %v366 = vpop.f32.mrf.mxu0
    %v367 = vpop.f32.mrf.mxu0
    %v368 = vpop.f32.mrf.mxu0
    %369 = vdwg.mxu0
    %v370 = vadd.f32 %v146, %v365
    %v371 = vmul.f32 %v370, %v228
    %v372 = vtanh.pop %v371
    %v373 = vmul.f32 %v228, %v372
    %v374 = vadd.f32 %v373, %v235
    %v375 = vmul.f32 %v374, %v316
    %377 = vrot.lane.b32.xlu0 %v374, 64
    %v378 = vpop.permute.xlu0 %377
    %v380 = vmul.f32 %v374, %v378
    %382 = vrot.lane.b32.xlu0 %v380, 32
    %v383 = vpop.permute.xlu0 %382
    %v385 = vadd.f32 %v375, %v383
    %v386 = vtanh.pop %v385
    %388 = vrot.lane.b32.xlu0 %v386, 64
    %v389 = vpop.permute.xlu0 %388
    %v391 = vmul.f32 %v374, %v389
    %v392 = vpack.c.bf16 %v391, %v391
    %394 = vrot.lane.b32.xlu0 %v392, 32
    %v395 = vpop.permute.xlu0 %394
    %v397 = vsel %vm180, %v395, 0
    %399 = vmatprep.subr.bf16.mxu0 0
    %400 = vmatpush1.bf16.msra.mxu0 0
    %401 = vmatprep.subr.bf16.mxu0 0
    %402 = vmatpush1.bf16.msra.mxu0 0
    %403 = vmatprep.subr.bf16.mxu0 0
    %404 = vmatpush1.bf16.msra.mxu0 0
    %405 = vmatprep.subr.bf16.mxu0 0
    %406 = vmatpush1.bf16.msra.mxu0 0
    %407 = vmatprep.subr.bf16.mxu0 0
    %408 = vmatpush1.bf16.msra.mxu0 0
    %409 = vmatprep.subr.bf16.mxu0 0
    %410 = vmatpush1.bf16.msra.mxu0 0
    %411 = vmatprep.subr.bf16.mxu0 0
    %412 = vmatpush1.bf16.msra.mxu0 %v177
    %413 = vmatprep.subr.bf16.mxu0 0
    %414 = vmatpush1.bf16.msra.mxu0 %v176
    %415 = vmatprep.subr.bf16.mxu0 0
    %416 = vmatpush2.bf16.msra.mxu0 0
    %417 = vmatprep.subr.bf16.mxu0 0
    %418 = vmatpush2.bf16.msra.mxu0 0
    %419 = vmatprep.subr.bf16.mxu0 0
    %420 = vmatpush2.bf16.msra.mxu0 0
    %421 = vmatprep.subr.bf16.mxu0 0
    %422 = vmatpush2.bf16.msra.mxu0 0
    %423 = vmatprep.subr.bf16.mxu0 0
    %424 = vmatpush2.bf16.msra.mxu0 0
    %425 = vmatprep.subr.bf16.mxu0 0
    %426 = vmatpush2.bf16.msra.mxu0 0
    %427 = vmatprep.subr.bf16.mxu0 0
    %428 = vmatpush2.bf16.msra.mxu0 0
    %429 = vmatprep.subr.bf16.mxu0 0
    %430 = vmatpush2.bf16.msra.mxu0 0
    %431 = vmatprep.mubr.bf16.mxu0 0
    %432 = vmatmul.mubr.bf16.gmra.mxu0 %v397
    %v433 = vpop.f32.mrf.mxu0
    %v434 = vadd.f32 0.0, %v433
    %v435 = vpop.f32.mrf.mxu0
    %v436 = vpop.f32.mrf.mxu0
    %v437 = vpop.f32.mrf.mxu0
    %438 = vdwg.mxu0
    %v439 = vadd.f32 %v149, %v434
    %v440 = vmul.f32 %v439, %v228
    %v441 = vtanh.pop %v440
    %v442 = vmul.f32 %v228, %v441
    %v443 = vadd.f32 %v442, %v235
    %v444 = vmul.f32 %v443, %v385
    %446 = vrot.lane.b32.xlu0 %v443, 64
    %v447 = vpop.permute.xlu0 %446
    %v449 = vmul.f32 %v443, %v447
    %451 = vrot.lane.b32.xlu0 %v449, 32
    %v452 = vpop.permute.xlu0 %451
    %v454 = vadd.f32 %v444, %v452
    %v455 = vtanh.pop %v454
    %457 = vrot.lane.b32.xlu0 %v455, 64
    %v458 = vpop.permute.xlu0 %457
    %v460 = vmul.f32 %v443, %v458
    %v461 = vpack.c.bf16 %v460, %v460
    %463 = vrot.lane.b32.xlu0 %v461, 32
    %v464 = vpop.permute.xlu0 %463
    %v466 = vsel %vm180, %v464, 0
    %468 = vmatprep.subr.bf16.mxu0 0
    %469 = vmatpush1.bf16.msra.mxu0 0
    %470 = vmatprep.subr.bf16.mxu0 0
    %471 = vmatpush1.bf16.msra.mxu0 0
    %472 = vmatprep.subr.bf16.mxu0 0
    %473 = vmatpush1.bf16.msra.mxu0 0
    %474 = vmatprep.subr.bf16.mxu0 0
    %475 = vmatpush1.bf16.msra.mxu0 0
    %476 = vmatprep.subr.bf16.mxu0 0
    %477 = vmatpush1.bf16.msra.mxu0 0
    %478 = vmatprep.subr.bf16.mxu0 0
    %479 = vmatpush1.bf16.msra.mxu0 0
    %480 = vmatprep.subr.bf16.mxu0 0
    %481 = vmatpush1.bf16.msra.mxu0 %v177
    %482 = vmatprep.subr.bf16.mxu0 0
    %483 = vmatpush1.bf16.msra.mxu0 %v176
    %484 = vmatprep.subr.bf16.mxu0 0
    %485 = vmatpush2.bf16.msra.mxu0 0
    %486 = vmatprep.subr.bf16.mxu0 0
    %487 = vmatpush2.bf16.msra.mxu0 0
    %488 = vmatprep.subr.bf16.mxu0 0
    %489 = vmatpush2.bf16.msra.mxu0 0
    %490 = vmatprep.subr.bf16.mxu0 0
    %491 = vmatpush2.bf16.msra.mxu0 0
    %492 = vmatprep.subr.bf16.mxu0 0
    %493 = vmatpush2.bf16.msra.mxu0 0
    %494 = vmatprep.subr.bf16.mxu0 0
    %495 = vmatpush2.bf16.msra.mxu0 0
    %496 = vmatprep.subr.bf16.mxu0 0
    %497 = vmatpush2.bf16.msra.mxu0 0
    %498 = vmatprep.subr.bf16.mxu0 0
    %499 = vmatpush2.bf16.msra.mxu0 0
    %500 = vmatprep.mubr.bf16.mxu0 0
    %501 = vmatmul.mubr.bf16.gmra.mxu0 %v466
    %v502 = vpop.f32.mrf.mxu0
    %v503 = vadd.f32 0.0, %v502
    %v504 = vpop.f32.mrf.mxu0
    %v505 = vpop.f32.mrf.mxu0
    %v506 = vpop.f32.mrf.mxu0
    %507 = vdwg.mxu0
    %v508 = vadd.f32 %v154, %v503
    %v509 = vmul.f32 %v508, %v228
    %v510 = vtanh.pop %v509
    %v511 = vmul.f32 %v228, %v510
    %v512 = vadd.f32 %v511, %v235
    %v513 = vmul.f32 %v512, %v454
    %515 = vrot.lane.b32.xlu0 %v512, 64
    %v516 = vpop.permute.xlu0 %515
    %v518 = vmul.f32 %v512, %v516
    %520 = vrot.lane.b32.xlu0 %v518, 32
    %v521 = vpop.permute.xlu0 %520
    %v523 = vadd.f32 %v513, %v521
    %v524 = vtanh.pop %v523
    %526 = vrot.lane.b32.xlu0 %v524, 64
    %v527 = vpop.permute.xlu0 %526
    %v529 = vmul.f32 %v512, %v527
    %v530 = vpack.c.bf16 %v529, %v529
    %532 = vrot.lane.b32.xlu0 %v530, 32
    %v533 = vpop.permute.xlu0 %532
    %v535 = vsel %vm180, %v533, 0
    %537 = vmatprep.subr.bf16.mxu0 0
    %538 = vmatpush1.bf16.msra.mxu0 0
    %539 = vmatprep.subr.bf16.mxu0 0
    %540 = vmatpush1.bf16.msra.mxu0 0
    %541 = vmatprep.subr.bf16.mxu0 0
    %542 = vmatpush1.bf16.msra.mxu0 0
    %543 = vmatprep.subr.bf16.mxu0 0
    %544 = vmatpush1.bf16.msra.mxu0 0
    %545 = vmatprep.subr.bf16.mxu0 0
    %546 = vmatpush1.bf16.msra.mxu0 0
    %547 = vmatprep.subr.bf16.mxu0 0
    %548 = vmatpush1.bf16.msra.mxu0 0
    %549 = vmatprep.subr.bf16.mxu0 0
    %550 = vmatpush1.bf16.msra.mxu0 %v177
    %551 = vmatprep.subr.bf16.mxu0 0
    %552 = vmatpush1.bf16.msra.mxu0 %v176
    %553 = vmatprep.subr.bf16.mxu0 0
    %554 = vmatpush2.bf16.msra.mxu0 0
    %555 = vmatprep.subr.bf16.mxu0 0
    %556 = vmatpush2.bf16.msra.mxu0 0
    %557 = vmatprep.subr.bf16.mxu0 0
    %558 = vmatpush2.bf16.msra.mxu0 0
    %559 = vmatprep.subr.bf16.mxu0 0
    %560 = vmatpush2.bf16.msra.mxu0 0
    %561 = vmatprep.subr.bf16.mxu0 0
    %562 = vmatpush2.bf16.msra.mxu0 0
    %563 = vmatprep.subr.bf16.mxu0 0
    %564 = vmatpush2.bf16.msra.mxu0 0
    %565 = vmatprep.subr.bf16.mxu0 0
    %566 = vmatpush2.bf16.msra.mxu0 0
    %567 = vmatprep.subr.bf16.mxu0 0
    %568 = vmatpush2.bf16.msra.mxu0 0
    %569 = vmatprep.mubr.bf16.mxu0 0
    %570 = vmatmul.mubr.bf16.gmra.mxu0 %v535
    %v571 = vpop.f32.mrf.mxu0
    %v572 = vadd.f32 0.0, %v571
    %v573 = vpop.f32.mrf.mxu0
    %v574 = vpop.f32.mrf.mxu0
    %v575 = vpop.f32.mrf.mxu0
    %576 = vdwg.mxu0
    %v577 = vadd.f32 %v157, %v572
    %v578 = vmul.f32 %v577, %v228
    %v579 = vtanh.pop %v578
    %v580 = vmul.f32 %v228, %v579
    %v581 = vadd.f32 %v580, %v235
    %v582 = vmul.f32 %v581, %v523
    %584 = vrot.lane.b32.xlu0 %v581, 64
    %v585 = vpop.permute.xlu0 %584
    %v587 = vmul.f32 %v581, %v585
    %589 = vrot.lane.b32.xlu0 %v587, 32
    %v590 = vpop.permute.xlu0 %589
    %v592 = vadd.f32 %v582, %v590
    %v593 = vtanh.pop %v592
    %595 = vrot.lane.b32.xlu0 %v593, 64
    %v596 = vpop.permute.xlu0 %595
    %v598 = vmul.f32 %v581, %v596
    %v599 = vpack.c.bf16 %v598, %v598
    %601 = vrot.lane.b32.xlu0 %v599, 32
    %v602 = vpop.permute.xlu0 %601
    %v604 = vsel %vm180, %v602, 0
    %606 = vmatprep.subr.bf16.mxu0 0
    %607 = vmatpush1.bf16.msra.mxu0 0
    %608 = vmatprep.subr.bf16.mxu0 0
    %609 = vmatpush1.bf16.msra.mxu0 0
    %610 = vmatprep.subr.bf16.mxu0 0
    %611 = vmatpush1.bf16.msra.mxu0 0
    %612 = vmatprep.subr.bf16.mxu0 0
    %613 = vmatpush1.bf16.msra.mxu0 0
    %614 = vmatprep.subr.bf16.mxu0 0
    %615 = vmatpush1.bf16.msra.mxu0 0
    %616 = vmatprep.subr.bf16.mxu0 0
    %617 = vmatpush1.bf16.msra.mxu0 0
    %618 = vmatprep.subr.bf16.mxu0 0
    %619 = vmatpush1.bf16.msra.mxu0 %v177
    %620 = vmatprep.subr.bf16.mxu0 0
    %621 = vmatpush1.bf16.msra.mxu0 %v176
    %622 = vmatprep.subr.bf16.mxu0 0
    %623 = vmatpush2.bf16.msra.mxu0 0
    %624 = vmatprep.subr.bf16.mxu0 0
    %625 = vmatpush2.bf16.msra.mxu0 0
    %626 = vmatprep.subr.bf16.mxu0 0
    %627 = vmatpush2.bf16.msra.mxu0 0
    %628 = vmatprep.subr.bf16.mxu0 0
    %629 = vmatpush2.bf16.msra.mxu0 0
    %630 = vmatprep.subr.bf16.mxu0 0
    %631 = vmatpush2.bf16.msra.mxu0 0
    %632 = vmatprep.subr.bf16.mxu0 0
    %633 = vmatpush2.bf16.msra.mxu0 0
    %634 = vmatprep.subr.bf16.mxu0 0
    %635 = vmatpush2.bf16.msra.mxu0 0
    %636 = vmatprep.subr.bf16.mxu0 0
    %637 = vmatpush2.bf16.msra.mxu0 0
    %638 = vmatprep.mubr.bf16.mxu0 0
    %639 = vmatmul.mubr.bf16.gmra.mxu0 %v604
    %v640 = vpop.f32.mrf.mxu0
    %v641 = vadd.f32 0.0, %v640
    %v642 = vpop.f32.mrf.mxu0
    %v643 = vpop.f32.mrf.mxu0
    %v644 = vpop.f32.mrf.mxu0
    %645 = vdwg.mxu0
    %v646 = vadd.f32 %v162, %v641
    %v647 = vmul.f32 %v646, %v228
    %v648 = vtanh.pop %v647
    %v649 = vmul.f32 %v228, %v648
    %v650 = vadd.f32 %v649, %v235
    %v651 = vmul.f32 %v650, %v592
    %653 = vrot.lane.b32.xlu0 %v650, 64
    %v654 = vpop.permute.xlu0 %653
    %v656 = vmul.f32 %v650, %v654
    %658 = vrot.lane.b32.xlu0 %v656, 32
    %v659 = vpop.permute.xlu0 %658
    %v661 = vadd.f32 %v651, %v659
    %v662 = vtanh.pop %v661
    %664 = vrot.lane.b32.xlu0 %v662, 64
    %v665 = vpop.permute.xlu0 %664
    %v667 = vmul.f32 %v650, %v665
    %v668 = vpack.c.bf16 %v667, %v667
    %670 = vrot.lane.b32.xlu0 %v668, 32
    %v671 = vpop.permute.xlu0 %670
    %v673 = vsel %vm180, %v671, 0
    %675 = vmatprep.subr.bf16.mxu0 0
    %676 = vmatpush1.bf16.msra.mxu0 0
    %677 = vmatprep.subr.bf16.mxu0 0
    %678 = vmatpush1.bf16.msra.mxu0 0
    %679 = vmatprep.subr.bf16.mxu0 0
    %680 = vmatpush1.bf16.msra.mxu0 0
    %681 = vmatprep.subr.bf16.mxu0 0
    %682 = vmatpush1.bf16.msra.mxu0 0
    %683 = vmatprep.subr.bf16.mxu0 0
    %684 = vmatpush1.bf16.msra.mxu0 0
    %685 = vmatprep.subr.bf16.mxu0 0
    %686 = vmatpush1.bf16.msra.mxu0 0
    %687 = vmatprep.subr.bf16.mxu0 0
    %688 = vmatpush1.bf16.msra.mxu0 %v177
    %689 = vmatprep.subr.bf16.mxu0 0
    %690 = vmatpush1.bf16.msra.mxu0 %v176
    %691 = vmatprep.subr.bf16.mxu0 0
    %692 = vmatpush2.bf16.msra.mxu0 0
    %693 = vmatprep.subr.bf16.mxu0 0
    %694 = vmatpush2.bf16.msra.mxu0 0
    %695 = vmatprep.subr.bf16.mxu0 0
    %696 = vmatpush2.bf16.msra.mxu0 0
    %697 = vmatprep.subr.bf16.mxu0 0
    %698 = vmatpush2.bf16.msra.mxu0 0
    %699 = vmatprep.subr.bf16.mxu0 0
    %700 = vmatpush2.bf16.msra.mxu0 0
    %701 = vmatprep.subr.bf16.mxu0 0
    %702 = vmatpush2.bf16.msra.mxu0 0
    %703 = vmatprep.subr.bf16.mxu0 0
    %704 = vmatpush2.bf16.msra.mxu0 0
    %705 = vmatprep.subr.bf16.mxu0 0
    %706 = vmatpush2.bf16.msra.mxu0 0
    %707 = vmatprep.mubr.bf16.mxu0 0
    %708 = vmatmul.mubr.bf16.gmra.mxu0 %v673
    %v709 = vpop.f32.mrf.mxu0
    %v710 = vadd.f32 0.0, %v709
    %v711 = vpop.f32.mrf.mxu0
    %v712 = vpop.f32.mrf.mxu0
    %v713 = vpop.f32.mrf.mxu0
    %714 = vdwg.mxu0
    %v715 = vadd.f32 %v165, %v710
    %v716 = vmul.f32 %v715, %v228
    %v717 = vtanh.pop %v716
    %v718 = vmul.f32 %v228, %v717
    %v719 = vadd.f32 %v718, %v235
    %v720 = vmul.f32 %v719, %v661
    %722 = vrot.lane.b32.xlu0 %v719, 64
    %v723 = vpop.permute.xlu0 %722
    %v725 = vmul.f32 %v719, %v723
    %727 = vrot.lane.b32.xlu0 %v725, 32
    %v728 = vpop.permute.xlu0 %727
    %v730 = vadd.f32 %v720, %v728
    %v731 = vtanh.pop %v730
    %733 = vrot.lane.b32.xlu0 %v731, 64
    %v734 = vpop.permute.xlu0 %733
    %v736 = vmul.f32 %v719, %v734
    %v737 = vld [vmem:[#allocation6 + $0x18] sm:$0xff]
    %v738 = vld [vmem:[#allocation6 + $0x20] sm:$0xff]
    %v739 = vld [vmem:[#allocation6 + $0x28] sm:$0xff]
    %v740 = vld [vmem:[#allocation6 + $0x30] sm:$0xff]
    %v741 = vld [vmem:[#allocation6 + $0x38] sm:$0x1]
    %v742 = vlaneseq
    %v743 = vshrl.u32 %v742, 7
    %v744 = vsub.s32 0, %v743
    %v745 = vrot.slane %v741, %v744
    %754 = vrot.lane.b32.xlu0 %v253, 32
    %v755 = vpop.permute.xlu0 %754
    %756 = vrot.lane.b32.xlu0 %v322, 32
    %v757 = vpop.permute.xlu0 %756
    %758 = vrot.lane.b32.xlu0 %v391, 32
    %v759 = vpop.permute.xlu0 %758
    %760 = vrot.lane.b32.xlu0 %v460, 32
    %v761 = vpop.permute.xlu0 %760
    %762 = vrot.lane.b32.xlu0 %v529, 32
    %v763 = vpop.permute.xlu0 %762
    %764 = vrot.lane.b32.xlu0 %v598, 32
    %v765 = vpop.permute.xlu0 %764
    %766 = vrot.lane.b32.xlu0 %v667, 32
    %v767 = vpop.permute.xlu0 %766
    %768 = vrot.lane.b32.xlu0 %v736, 32
    %v769 = vpop.permute.xlu0 %768
    %v770 = vsel %vm180, %v755, 0
    %v772 = vsel %vm180, %v757, 0
    %v774 = vsel %vm180, %v759, 0
    %v776 = vsel %vm180, %v761, 0
    %v778 = vsel %vm180, %v763, 0
    %v780 = vsel %vm180, %v765, 0
    %v782 = vsel %vm180, %v767, 0
    %v784 = vsel %vm180, %v769, 0
    %786 = vmatprep.subr.mxu0 0.0
    %787 = vmatpush1.msra.mxu0 0.0
    %788 = vmatprep.subr.mxu0 0.0
    %789 = vmatpush1.msra.mxu0 0.0
    %790 = vmatprep.subr.mxu0 0.0
    %791 = vmatpush1.msra.mxu0 0.0
    %792 = vmatprep.subr.mxu0 0.0
    %793 = vmatpush1.msra.mxu0 0.0
    %794 = vmatprep.subr.mxu0 0.0
    %795 = vmatpush1.msra.mxu0 0.0
    %796 = vmatprep.subr.mxu0 0.0
    %797 = vmatpush1.msra.mxu0 0.0
    %798 = vmatprep.subr.mxu0 0.0
    %799 = vmatpush1.msra.mxu0 0.0
    %800 = vmatprep.subr.mxu0 0.0
    %801 = vmatpush1.msra.mxu0 0.0
    %802 = vmatprep.subr.mxu0 0.0
    %803 = vmatpush1.msra.mxu0 0.0
    %804 = vmatprep.subr.mxu0 0.0
    %805 = vmatpush1.msra.mxu0 0.0
    %806 = vmatprep.subr.mxu0 0.0
    %807 = vmatpush1.msra.mxu0 0.0
    %808 = vmatprep.subr.mxu0 0.0
    %809 = vmatpush1.msra.mxu0 0.0
    %810 = vmatprep.subr.mxu0 0.0
    %811 = vmatpush1.msra.mxu0 %v740
    %812 = vmatprep.subr.mxu0 0.0
    %813 = vmatpush1.msra.mxu0 %v739
    %814 = vmatprep.subr.mxu0 0.0
    %815 = vmatpush1.msra.mxu0 %v738
    %816 = vmatprep.subr.mxu0 0.0
    %817 = vmatpush1.msra.mxu0 %v737
    %818 = vmatprep.subr.mxu0 0.0
    %819 = vmatpush2.msra.mxu0 0.0
    %820 = vmatprep.subr.mxu0 0.0
    %821 = vmatpush2.msra.mxu0 0.0
    %822 = vmatprep.subr.mxu0 0.0
    %823 = vmatpush2.msra.mxu0 0.0
    %824 = vmatprep.subr.mxu0 0.0
    %825 = vmatpush2.msra.mxu0 0.0
    %826 = vmatprep.subr.mxu0 0.0
    %827 = vmatpush2.msra.mxu0 0.0
    %828 = vmatprep.subr.mxu0 0.0
    %829 = vmatpush2.msra.mxu0 0.0
    %830 = vmatprep.subr.mxu0 0.0
    %831 = vmatpush2.msra.mxu0 0.0
    %832 = vmatprep.subr.mxu0 0.0
    %833 = vmatpush2.msra.mxu0 0.0
    %834 = vmatprep.subr.mxu0 0.0
    %835 = vmatpush2.msra.mxu0 0.0
    %836 = vmatprep.subr.mxu0 0.0
    %837 = vmatpush2.msra.mxu0 0.0
    %838 = vmatprep.subr.mxu0 0.0
    %839 = vmatpush2.msra.mxu0 0.0
    %840 = vmatprep.subr.mxu0 0.0
    %841 = vmatpush2.msra.mxu0 0.0
    %842 = vmatprep.subr.mxu0 0.0
    %843 = vmatpush2.msra.mxu0 0.0
    %844 = vmatprep.subr.mxu0 0.0
    %845 = vmatpush2.msra.mxu0 0.0
    %846 = vmatprep.subr.mxu0 0.0
    %847 = vmatpush2.msra.mxu0 0.0
    %848 = vmatprep.subr.mxu0 0.0
    %849 = vmatpush2.msra.mxu0 0.0
    %850 = vmatprep.mubr.f32.mxu0 0.0
    %851 = vmatmul.mubr.f32.gmra.mxu0 %v770
    %v852 = vpop.f32.mrf.mxu0
    %v853 = vadd.f32 %v745, %v852
    %v854 = vpop.f32.mrf.mxu0
    %855 = vmatprep.mubr.f32.mxu0 0.0
    %856 = vmatmul.mubr.f32.gmra.mxu0 %v772
    %v857 = vpop.f32.mrf.mxu0
    %v858 = vadd.f32 %v745, %v857
    %v859 = vpop.f32.mrf.mxu0
    %860 = vmatprep.mubr.f32.mxu0 0.0
    %861 = vmatmul.mubr.f32.gmra.mxu0 %v774
    %v862 = vpop.f32.mrf.mxu0
    %v863 = vadd.f32 %v745, %v862
    %v864 = vpop.f32.mrf.mxu0
    %865 = vmatprep.mubr.f32.mxu0 0.0
    %866 = vmatmul.mubr.f32.gmra.mxu0 %v776
    %v867 = vpop.f32.mrf.mxu0
    %v868 = vadd.f32 %v745, %v867
    %v869 = vpop.f32.mrf.mxu0
    %870 = vmatprep.mubr.f32.mxu0 0.0
    %871 = vmatmul.mubr.f32.gmra.mxu0 %v778
    %v872 = vpop.f32.mrf.mxu0
    %v873 = vadd.f32 %v745, %v872
    %v874 = vpop.f32.mrf.mxu0
    %875 = vmatprep.mubr.f32.mxu0 0.0
    %876 = vmatmul.mubr.f32.gmra.mxu0 %v780
    %v877 = vpop.f32.mrf.mxu0
    %v878 = vadd.f32 %v745, %v877
    %v879 = vpop.f32.mrf.mxu0
    %880 = vmatprep.mubr.f32.mxu0 0.0
    %881 = vmatmul.mubr.f32.gmra.mxu0 %v782
    %v882 = vpop.f32.mrf.mxu0
    %v883 = vadd.f32 %v745, %v882
    %v884 = vpop.f32.mrf.mxu0
    %885 = vmatprep.mubr.f32.mxu0 0.0
    %886 = vmatmul.mubr.f32.gmra.mxu0 %v784
    %v887 = vpop.f32.mrf.mxu0
    %v888 = vadd.f32 %v745, %v887
    %v889 = vpop.f32.mrf.mxu0
    %890 = vdwg.mxu0
    %v891 = vld [vmem:[#allocation6 + $0xd0] sm:$0xff]
    %v892 = vld [vmem:[#allocation6 + $0xd8] sm:$0xff]
    %v893 = vld [vmem:[#allocation6 + $0xe0] sm:$0xff]
    %v894 = vld [vmem:[#allocation6 + $0xe8] sm:$0xff]
    %v895 = vld [vmem:[#allocation6 + $0xf0] sm:$0xf]
    %897 = vrot.lane.b32.xlu0 %v888, 32
    %v898 = vpop.permute.xlu0 %897
    %v900 = vmul.f32 %v853, %v898
    %v901 = vmul.f32 %v858, %v898
    %v902 = vmul.f32 %v863, %v898
    %v903 = vmul.f32 %v868, %v898
    %v904 = vmul.f32 %v873, %v898
    %v905 = vmul.f32 %v878, %v898
    %v906 = vmul.f32 %v883, %v898
    %v907 = vmul.f32 %v888, %v898
    %916 = vrot.lane.b32.xlu0 %v900, 96
    %v917 = vpop.permute.xlu0 %916
    %918 = vrot.lane.b32.xlu0 %v901, 96
    %v919 = vpop.permute.xlu0 %918
    %920 = vrot.lane.b32.xlu0 %v902, 96
    %v921 = vpop.permute.xlu0 %920
    %922 = vrot.lane.b32.xlu0 %v903, 96
    %v923 = vpop.permute.xlu0 %922
    %924 = vrot.lane.b32.xlu0 %v904, 96
    %v925 = vpop.permute.xlu0 %924
    %926 = vrot.lane.b32.xlu0 %v905, 96
    %v927 = vpop.permute.xlu0 %926
    %928 = vrot.lane.b32.xlu0 %v906, 96
    %v929 = vpop.permute.xlu0 %928
    %930 = vrot.lane.b32.xlu0 %v907, 96
    %v931 = vpop.permute.xlu0 %930
    %v932 = vsel %vm180, %v917, 0
    %v934 = vsel %vm180, %v919, 0
    %v936 = vsel %vm180, %v921, 0
    %v938 = vsel %vm180, %v923, 0
    %v940 = vsel %vm180, %v925, 0
    %v942 = vsel %vm180, %v927, 0
    %v944 = vsel %vm180, %v929, 0
    %v946 = vsel %vm180, %v931, 0
    %948 = vmatprep.subr.mxu0 0.0
    %949 = vmatpush1.msra.mxu0 0.0
    %950 = vmatprep.subr.mxu0 0.0
    %951 = vmatpush1.msra.mxu0 0.0
    %952 = vmatprep.subr.mxu0 0.0
    %953 = vmatpush1.msra.mxu0 0.0
    %954 = vmatprep.subr.mxu0 0.0
    %955 = vmatpush1.msra.mxu0 0.0
    %956 = vmatprep.subr.mxu0 0.0
    %957 = vmatpush1.msra.mxu0 0.0
    %958 = vmatprep.subr.mxu0 0.0
    %959 = vmatpush1.msra.mxu0 0.0
    %960 = vmatprep.subr.mxu0 0.0
    %961 = vmatpush1.msra.mxu0 0.0
    %962 = vmatprep.subr.mxu0 0.0
    %963 = vmatpush1.msra.mxu0 0.0
    %964 = vmatprep.subr.mxu0 0.0
    %965 = vmatpush1.msra.mxu0 0.0
    %966 = vmatprep.subr.mxu0 0.0
    %967 = vmatpush1.msra.mxu0 0.0
    %968 = vmatprep.subr.mxu0 0.0
    %969 = vmatpush1.msra.mxu0 0.0
    %970 = vmatprep.subr.mxu0 0.0
    %971 = vmatpush1.msra.mxu0 0.0
    %972 = vmatprep.subr.mxu0 0.0
    %973 = vmatpush1.msra.mxu0 %v894
    %974 = vmatprep.subr.mxu0 0.0
    %975 = vmatpush1.msra.mxu0 %v893
    %976 = vmatprep.subr.mxu0 0.0
    %977 = vmatpush1.msra.mxu0 %v892
    %978 = vmatprep.subr.mxu0 0.0
    %979 = vmatpush1.msra.mxu0 %v891
    %980 = vmatprep.subr.mxu0 0.0
    %981 = vmatpush2.msra.mxu0 0.0
    %982 = vmatprep.subr.mxu0 0.0
    %983 = vmatpush2.msra.mxu0 0.0
    %984 = vmatprep.subr.mxu0 0.0
    %985 = vmatpush2.msra.mxu0 0.0
    %986 = vmatprep.subr.mxu0 0.0
    %987 = vmatpush2.msra.mxu0 0.0
    %988 = vmatprep.subr.mxu0 0.0
    %989 = vmatpush2.msra.mxu0 0.0
    %990 = vmatprep.subr.mxu0 0.0
    %991 = vmatpush2.msra.mxu0 0.0
    %992 = vmatprep.subr.mxu0 0.0
    %993 = vmatpush2.msra.mxu0 0.0
    %994 = vmatprep.subr.mxu0 0.0
    %995 = vmatpush2.msra.mxu0 0.0
    %996 = vmatprep.subr.mxu0 0.0
    %997 = vmatpush2.msra.mxu0 0.0
    %998 = vmatprep.subr.mxu0 0.0
    %999 = vmatpush2.msra.mxu0 0.0
    %1000 = vmatprep.subr.mxu0 0.0
    %1001 = vmatpush2.msra.mxu0 0.0
    %1002 = vmatprep.subr.mxu0 0.0
    %1003 = vmatpush2.msra.mxu0 0.0
    %1004 = vmatprep.subr.mxu0 0.0
    %1005 = vmatpush2.msra.mxu0 0.0
    %1006 = vmatprep.subr.mxu0 0.0
    %1007 = vmatpush2.msra.mxu0 0.0
    %1008 = vmatprep.subr.mxu0 0.0
    %1009 = vmatpush2.msra.mxu0 0.0
    %1010 = vmatprep.subr.mxu0 0.0
    %1011 = vmatpush2.msra.mxu0 0.0
    %1012 = vmatprep.mubr.f32.mxu0 0.0
    %1013 = vmatmul.mubr.f32.gmra.mxu0 %v932
    %v1014 = vpop.f32.mrf.mxu0
    %v1015 = vadd.f32 0.0, %v1014
    %v1016 = vpop.f32.mrf.mxu0
    %1017 = vmatprep.mubr.f32.mxu0 0.0
    %1018 = vmatmul.mubr.f32.gmra.mxu0 %v934
    %v1019 = vpop.f32.mrf.mxu0
    %v1020 = vadd.f32 0.0, %v1019
    %v1021 = vpop.f32.mrf.mxu0
    %1022 = vmatprep.mubr.f32.mxu0 0.0
    %1023 = vmatmul.mubr.f32.gmra.mxu0 %v936
    %v1024 = vpop.f32.mrf.mxu0
    %v1025 = vadd.f32 0.0, %v1024
    %v1026 = vpop.f32.mrf.mxu0
    %1027 = vmatprep.mubr.f32.mxu0 0.0
    %1028 = vmatmul.mubr.f32.gmra.mxu0 %v938
    %v1029 = vpop.f32.mrf.mxu0
    %v1030 = vadd.f32 0.0, %v1029
    %v1031 = vpop.f32.mrf.mxu0
    %1032 = vmatprep.mubr.f32.mxu0 0.0
    %1033 = vmatmul.mubr.f32.gmra.mxu0 %v940
    %v1034 = vpop.f32.mrf.mxu0
    %v1035 = vadd.f32 0.0, %v1034
    %v1036 = vpop.f32.mrf.mxu0
    %1037 = vmatprep.mubr.f32.mxu0 0.0
    %1038 = vmatmul.mubr.f32.gmra.mxu0 %v942
    %v1039 = vpop.f32.mrf.mxu0
    %v1040 = vadd.f32 0.0, %v1039
    %v1041 = vpop.f32.mrf.mxu0
    %1042 = vmatprep.mubr.f32.mxu0 0.0
    %1043 = vmatmul.mubr.f32.gmra.mxu0 %v944
    %v1044 = vpop.f32.mrf.mxu0
    %v1045 = vadd.f32 0.0, %v1044
    %v1046 = vpop.f32.mrf.mxu0
    %1047 = vmatprep.mubr.f32.mxu0 0.0
    %1048 = vmatmul.mubr.f32.gmra.mxu0 %v946
    %v1049 = vpop.f32.mrf.mxu0
    %v1050 = vadd.f32 0.0, %v1049
    %v1051 = vpop.f32.mrf.mxu0
    %1052 = vdwg.mxu0
    %v1053 = vmul.f32 %v1015, 0.35355338
    %v1054 = vmul.f32 %v1020, 0.35355338
    %v1055 = vmul.f32 %v1025, 0.35355338
    %v1056 = vmul.f32 %v1030, 0.35355338
    %v1057 = vmul.f32 %v1035, 0.35355338
    %v1058 = vmul.f32 %v1040, 0.35355338
    %v1059 = vmul.f32 %v1045, 0.35355338
    %v1060 = vmul.f32 %v1050, 0.35355338
    %vm1061 = vcmask 31744
    %v1062 = vsel %vm1061, %v1053, -inf
    %v1063 = vsel %vm1061, %v1054, -inf
    %v1064 = vsel %vm1061, %v1055, -inf
    %v1065 = vsel %vm1061, %v1056, -inf
    %v1066 = vsel %vm1061, %v1057, -inf
    %v1067 = vmax.f32 %v1062, %v1066
    %v1068 = vsel %vm1061, %v1058, -inf
    %v1069 = vmax.f32 %v1063, %v1068
    %v1070 = vsel %vm1061, %v1059, -inf
    %v1071 = vmax.f32 %v1064, %v1070
    %v1072 = vsel %vm1061, %v1060, -inf
    %v1073 = vmax.f32 %v1065, %v1072
    %v1074 = vmax.f32 %v1067, %v1069
    %v1075 = vmax.f32 %v1071, %v1073
    %v1076 = vmax.f32 %v1074, %v1075
    %v1077 = vsub.f32 %v1053, %v1076
    %v1078 = vsub.f32 %v1054, %v1076
    %v1079 = vsub.f32 %v1055, %v1076
    %v1080 = vsub.f32 %v1056, %v1076
    %v1081 = vsub.f32 %v1057, %v1076
    %v1082 = vsub.f32 %v1058, %v1076
    %v1083 = vsub.f32 %v1059, %v1076
    %v1084 = vsub.f32 %v1060, %v1076
    %v1085 = vmul.f32 %v1077, 1.442695
    %v1086 = vpow.pop %v1085
    %v1087 = vmul.f32 %v1078, 1.442695
    %v1088 = vpow.pop %v1087
    %v1089 = vmul.f32 %v1079, 1.442695
    %v1090 = vpow.pop %v1089
    %v1091 = vmul.f32 %v1080, 1.442695
    %v1092 = vpow.pop %v1091
    %v1093 = vmul.f32 %v1081, 1.442695
    %v1094 = vpow.pop %v1093
    %v1095 = vmul.f32 %v1082, 1.442695
    %v1096 = vpow.pop %v1095
    %v1097 = vmul.f32 %v1083, 1.442695
    %v1098 = vpow.pop %v1097
    %v1099 = vmul.f32 %v1084, 1.442695
    %v1100 = vpow.pop %v1099
    %v1101 = vsel %vm1061, %v1086, 0.0
    %v1102 = vsel %vm1061, %v1088, 0.0
    %v1103 = vadd.f32 %v1101, %v1102
    %v1104 = vsel %vm1061, %v1090, 0.0
    %v1105 = vadd.f32 %v1103, %v1104
    %v1106 = vsel %vm1061, %v1092, 0.0
    %v1107 = vadd.f32 %v1105, %v1106
    %v1108 = vsel %vm1061, %v1094, 0.0
    %v1109 = vadd.f32 %v1107, %v1108
    %v1110 = vsel %vm1061, %v1096, 0.0
    %v1111 = vadd.f32 %v1109, %v1110
    %v1112 = vsel %vm1061, %v1098, 0.0
    %v1113 = vadd.f32 %v1111, %v1112
    %v1114 = vsel %vm1061, %v1100, 0.0
    %v1115 = vadd.f32 %v1113, %v1114
    %v1116 = vrcp.pop %v1115
    %v1117 = vmul.f32 %v1086, %v1116
    %v1118 = vmul.f32 %v1088, %v1116
    %v1119 = vmul.f32 %v1090, %v1116
    %v1120 = vmul.f32 %v1092, %v1116
    %v1121 = vmul.f32 %v1094, %v1116
    %v1122 = vmul.f32 %v1096, %v1116
    %v1123 = vmul.f32 %v1098, %v1116
    %v1124 = vmul.f32 %v1100, %v1116
    %v1126 = vsel %vm1061, %v1117, 0
    %v1129 = vsel %vm1061, %v1118, 0
    %v1132 = vsel %vm1061, %v1119, 0
    %v1135 = vsel %vm1061, %v1120, 0
    %v1138 = vsel %vm1061, %v1121, 0
    %v1141 = vsel %vm1061, %v1122, 0
    %v1144 = vsel %vm1061, %v1123, 0
    %v1147 = vsel %vm1061, %v1124, 0
    %vm1149 = vcmask 1043456
    %v1151 = vsel %vm1149, %v895, 0
    %1153 = vmatprep.subr.mxu0 0.0
    %1154 = vmatpush1.msra.mxu0 0.0
    %1155 = vmatprep.subr.mxu0 0.0
    %1156 = vmatpush1.msra.mxu0 0.0
    %1157 = vmatprep.subr.mxu0 0.0
    %1158 = vmatpush1.msra.mxu0 0.0
    %1159 = vmatprep.subr.mxu0 0.0
    %1160 = vmatpush1.msra.mxu0 0.0
    %1161 = vmatprep.subr.mxu0 0.0
    %1162 = vmatpush1.msra.mxu0 0.0
    %1163 = vmatprep.subr.mxu0 0.0
    %1164 = vmatpush1.msra.mxu0 0.0
    %1165 = vmatprep.subr.mxu0 0.0
    %1166 = vmatpush1.msra.mxu0 0.0
    %1167 = vmatprep.subr.mxu0 0.0
    %1168 = vmatpush1.msra.mxu0 0.0
    %1169 = vmatprep.subr.mxu0 0.0
    %1170 = vmatpush1.msra.mxu0 0.0
    %1171 = vmatprep.subr.mxu0 0.0
    %1172 = vmatpush1.msra.mxu0 0.0
    %1173 = vmatprep.subr.mxu0 0.0
    %1174 = vmatpush1.msra.mxu0 0.0
    %1175 = vmatprep.subr.mxu0 0.0
    %1176 = vmatpush1.msra.mxu0 0.0
    %1177 = vmatprep.subr.mxu0 0.0
    %1178 = vmatpush1.msra.mxu0 0.0
    %1179 = vmatprep.subr.mxu0 0.0
    %1180 = vmatpush1.msra.mxu0 0.0
    %1181 = vmatprep.subr.mxu0 0.0
    %1182 = vmatpush1.msra.mxu0 0.0
    %1183 = vmatprep.subr.mxu0 0.0
    %1184 = vmatpush1.msra.mxu0 %v1151
    %1185 = vmatprep.subr.mxu0 0.0
    %1186 = vmatpush2.msra.mxu0 0.0
    %1187 = vmatprep.subr.mxu0 0.0
    %1188 = vmatpush2.msra.mxu0 0.0
    %1189 = vmatprep.subr.mxu0 0.0
    %1190 = vmatpush2.msra.mxu0 0.0
    %1191 = vmatprep.subr.mxu0 0.0
    %1192 = vmatpush2.msra.mxu0 0.0
    %1193 = vmatprep.subr.mxu0 0.0
    %1194 = vmatpush2.msra.mxu0 0.0
    %1195 = vmatprep.subr.mxu0 0.0
    %1196 = vmatpush2.msra.mxu0 0.0
    %1197 = vmatprep.subr.mxu0 0.0
    %1198 = vmatpush2.msra.mxu0 0.0
    %1199 = vmatprep.subr.mxu0 0.0
    %1200 = vmatpush2.msra.mxu0 0.0
    %1201 = vmatprep.subr.mxu0 0.0
    %1202 = vmatpush2.msra.mxu0 0.0
    %1203 = vmatprep.subr.mxu0 0.0
    %1204 = vmatpush2.msra.mxu0 0.0
    %1205 = vmatprep.subr.mxu0 0.0
    %1206 = vmatpush2.msra.mxu0 0.0
    %1207 = vmatprep.subr.mxu0 0.0
    %1208 = vmatpush2.msra.mxu0 0.0
    %1209 = vmatprep.subr.mxu0 0.0
    %1210 = vmatpush2.msra.mxu0 0.0
    %1211 = vmatprep.subr.mxu0 0.0
    %1212 = vmatpush2.msra.mxu0 0.0
    %1213 = vmatprep.subr.mxu0 0.0
    %1214 = vmatpush2.msra.mxu0 0.0
    %1215 = vmatprep.subr.mxu0 0.0
    %1216 = vmatpush2.msra.mxu0 0.0
    %1217 = vmatprep.mubr.f32.mxu0 0.0
    %1218 = vmatmul.mubr.f32.gmra.mxu0 %v1126
    %v1219 = vpop.f32.mrf.mxu0
    %v1220 = vadd.f32 0.0, %v1219
    %v1221 = vpop.f32.mrf.mxu0
    %1222 = vmatprep.mubr.f32.mxu0 0.0
    %1223 = vmatmul.mubr.f32.gmra.mxu0 %v1129
    %v1224 = vpop.f32.mrf.mxu0
    %v1225 = vadd.f32 0.0, %v1224
    %v1226 = vpop.f32.mrf.mxu0
    %1227 = vmatprep.mubr.f32.mxu0 0.0
    %1228 = vmatmul.mubr.f32.gmra.mxu0 %v1132
    %v1229 = vpop.f32.mrf.mxu0
    %v1230 = vadd.f32 0.0, %v1229
    %v1231 = vpop.f32.mrf.mxu0
    %1232 = vmatprep.mubr.f32.mxu0 0.0
    %1233 = vmatmul.mubr.f32.gmra.mxu0 %v1135
    %v1234 = vpop.f32.mrf.mxu0
    %v1235 = vadd.f32 0.0, %v1234
    %v1236 = vpop.f32.mrf.mxu0
    %1237 = vmatprep.mubr.f32.mxu0 0.0
    %1238 = vmatmul.mubr.f32.gmra.mxu0 %v1138
    %v1239 = vpop.f32.mrf.mxu0
    %v1240 = vadd.f32 0.0, %v1239
    %v1241 = vpop.f32.mrf.mxu0
    %1242 = vmatprep.mubr.f32.mxu0 0.0
    %1243 = vmatmul.mubr.f32.gmra.mxu0 %v1141
    %v1244 = vpop.f32.mrf.mxu0
    %v1245 = vadd.f32 0.0, %v1244
    %v1246 = vpop.f32.mrf.mxu0
    %1247 = vmatprep.mubr.f32.mxu0 0.0
    %1248 = vmatmul.mubr.f32.gmra.mxu0 %v1144
    %v1249 = vpop.f32.mrf.mxu0
    %v1250 = vadd.f32 0.0, %v1249
    %v1251 = vpop.f32.mrf.mxu0
    %1252 = vmatprep.mubr.f32.mxu0 0.0
    %1253 = vmatmul.mubr.f32.gmra.mxu0 %v1147
    %v1254 = vpop.f32.mrf.mxu0
    %v1255 = vadd.f32 0.0, %v1254
    %v1256 = vpop.f32.mrf.mxu0
    %1257 = vdwg.mxu0
    %1265 = vrot.lane.b32.xlu0 %v853, 64
    %v1266 = vpop.permute.xlu0 %1265
    %1267 = vrot.lane.b32.xlu0 %v858, 64
    %v1268 = vpop.permute.xlu0 %1267
    %1269 = vrot.lane.b32.xlu0 %v863, 64
    %v1270 = vpop.permute.xlu0 %1269
    %1271 = vrot.lane.b32.xlu0 %v868, 64
    %v1272 = vpop.permute.xlu0 %1271
    %1273 = vrot.lane.b32.xlu0 %v873, 64
    %v1274 = vpop.permute.xlu0 %1273
    %1275 = vrot.lane.b32.xlu0 %v878, 64
    %v1276 = vpop.permute.xlu0 %1275
    %1277 = vrot.lane.b32.xlu0 %v883, 64
    %v1278 = vpop.permute.xlu0 %1277
    %1279 = vrot.lane.b32.xlu0 %v888, 64
    %v1280 = vpop.permute.xlu0 %1279
    %v1289 = vmul.f32 %v1220, %v1266
    %v1290 = vmul.f32 %v1225, %v1268
    %v1291 = vmul.f32 %v1230, %v1270
    %v1292 = vmul.f32 %v1235, %v1272
    %v1293 = vmul.f32 %v1240, %v1274
    %v1294 = vmul.f32 %v1245, %v1276
    %v1295 = vmul.f32 %v1250, %v1278
    %v1296 = vmul.f32 %v1255, %v1280
    %v1297 = vsel %vm180, %v1289, 0.0
    %v1298 = vsel %vm180, %v1290, 0.0
    %v1299 = vadd.f32 %v1297, %v1298
    %v1300 = vsel %vm180, %v1291, 0.0
    %v1301 = vadd.f32 %v1299, %v1300
    %v1302 = vsel %vm180, %v1292, 0.0
    %v1303 = vadd.f32 %v1301, %v1302
    %v1304 = vsel %vm180, %v1293, 0.0
    %v1305 = vadd.f32 %v1303, %v1304
    %v1306 = vsel %vm180, %v1294, 0.0
    %v1307 = vadd.f32 %v1305, %v1306
    %v1308 = vsel %vm180, %v1295, 0.0
    %v1309 = vadd.f32 %v1307, %v1308
    %v1310 = vsel %vm180, %v1296, 0.0
    %v1311 = vadd.f32 %v1309, %v1310
    %v1312 = vld [vmem:[#allocation6 + $0x40] sm:$0xff]
    %v1313 = vld [vmem:[#allocation6 + $0x48] sm:$0xff]
    %v1314 = vld [vmem:[#allocation6 + $0x50] sm:$0xff]
    %v1315 = vld [vmem:[#allocation6 + $0x58] sm:$0xff]
    %v1316 = vld [vmem:[#allocation6 + $0x60] sm:$0x1]
    %v1317 = vlaneseq
    %v1318 = vshrl.u32 %v1317, 7
    %v1319 = vsub.s32 0, %v1318
    %v1320 = vrot.slane %v1316, %v1319
    %v1322 = vsel %vm180, %v1311, 0
    %1324 = vmatprep.subr.mxu0 0.0
    %1325 = vmatpush1.msra.mxu0 0.0
    %1326 = vmatprep.subr.mxu0 0.0
    %1327 = vmatpush1.msra.mxu0 0.0
    %1328 = vmatprep.subr.mxu0 0.0
    %1329 = vmatpush1.msra.mxu0 0.0
    %1330 = vmatprep.subr.mxu0 0.0
    %1331 = vmatpush1.msra.mxu0 0.0
    %1332 = vmatprep.subr.mxu0 0.0
    %1333 = vmatpush1.msra.mxu0 0.0
    %1334 = vmatprep.subr.mxu0 0.0
    %1335 = vmatpush1.msra.mxu0 0.0
    %1336 = vmatprep.subr.mxu0 0.0
    %1337 = vmatpush1.msra.mxu0 0.0
    %1338 = vmatprep.subr.mxu0 0.0
    %1339 = vmatpush1.msra.mxu0 0.0
    %1340 = vmatprep.subr.mxu0 0.0
    %1341 = vmatpush1.msra.mxu0 0.0
    %1342 = vmatprep.subr.mxu0 0.0
    %1343 = vmatpush1.msra.mxu0 0.0
    %1344 = vmatprep.subr.mxu0 0.0
    %1345 = vmatpush1.msra.mxu0 0.0
    %1346 = vmatprep.subr.mxu0 0.0
    %1347 = vmatpush1.msra.mxu0 0.0
    %1348 = vmatprep.subr.mxu0 0.0
    %1349 = vmatpush1.msra.mxu0 %v1315
    %1350 = vmatprep.subr.mxu0 0.0
    %1351 = vmatpush1.msra.mxu0 %v1314
    %1352 = vmatprep.subr.mxu0 0.0
    %1353 = vmatpush1.msra.mxu0 %v1313
    %1354 = vmatprep.subr.mxu0 0.0
    %1355 = vmatpush1.msra.mxu0 %v1312
    %1356 = vmatprep.subr.mxu0 0.0
    %1357 = vmatpush2.msra.mxu0 0.0
    %1358 = vmatprep.subr.mxu0 0.0
    %1359 = vmatpush2.msra.mxu0 0.0
    %1360 = vmatprep.subr.mxu0 0.0
    %1361 = vmatpush2.msra.mxu0 0.0
    %1362 = vmatprep.subr.mxu0 0.0
    %1363 = vmatpush2.msra.mxu0 0.0
    %1364 = vmatprep.subr.mxu0 0.0
    %1365 = vmatpush2.msra.mxu0 0.0
    %1366 = vmatprep.subr.mxu0 0.0
    %1367 = vmatpush2.msra.mxu0 0.0
    %1368 = vmatprep.subr.mxu0 0.0
    %1369 = vmatpush2.msra.mxu0 0.0
    %1370 = vmatprep.subr.mxu0 0.0
    %1371 = vmatpush2.msra.mxu0 0.0
    %1372 = vmatprep.subr.mxu0 0.0
    %1373 = vmatpush2.msra.mxu0 0.0
    %1374 = vmatprep.subr.mxu0 0.0
    %1375 = vmatpush2.msra.mxu0 0.0
    %1376 = vmatprep.subr.mxu0 0.0
    %1377 = vmatpush2.msra.mxu0 0.0
    %1378 = vmatprep.subr.mxu0 0.0
    %1379 = vmatpush2.msra.mxu0 0.0
    %1380 = vmatprep.subr.mxu0 0.0
    %1381 = vmatpush2.msra.mxu0 0.0
    %1382 = vmatprep.subr.mxu0 0.0
    %1383 = vmatpush2.msra.mxu0 0.0
    %1384 = vmatprep.subr.mxu0 0.0
    %1385 = vmatpush2.msra.mxu0 0.0
    %1386 = vmatprep.subr.mxu0 0.0
    %1387 = vmatpush2.msra.mxu0 0.0
    %1388 = vmatprep.mubr.f32.mxu0 0.0
    %1389 = vmatmul.mubr.f32.gmra.mxu0 %v1322
    %v1390 = vpop.f32.mrf.mxu0
    %v1391 = vadd.f32 %v1320, %v1390
    %v1392 = vpop.f32.mrf.mxu0
    %1393 = vdwg.mxu0
    %v1394 = vld [vmem:[%s1] sm:$0xff]
    %1396 = vrot.lane.b32.xlu0 %v1394, 32
    %v1397 = vpop.permute.xlu0 %1396
    %v1399 = vsel %vm180, %v1391, %v1397
    %v1400 = vld [vmem:[#allocation6 + $0x68] sm:$0xff]
    %v1401 = vld [vmem:[#allocation6 + $0x70] sm:$0xff]
    %v1402 = vld [vmem:[#allocation6 + $0x78] sm:$0xff]
    %v1403 = vld [vmem:[#allocation6 + $0x80] sm:$0xff]
    %v1404 = vld [vmem:[#allocation6 + $0x88] sm:$0xf]
    %v1405 = vld [vmem:[#allocation6 + $0x90] sm:$0x1]
    %v1406 = vlaneseq
    %v1407 = vshrl.u32 %v1406, 7
    %v1408 = vsub.s32 0, %v1407
    %v1409 = vrot.slane %v1405, %v1408
    %vm1410 = vcmask 293888
    %v1412 = vsel %vm1410, %v1399, 0
    %v1415 = vsel %vm1149, %v1404, 0
    %1417 = vmatprep.subr.mxu0 0.0
    %1418 = vmatpush1.msra.mxu0 0.0
    %1419 = vmatprep.subr.mxu0 0.0
    %1420 = vmatpush1.msra.mxu0 0.0
    %1421 = vmatprep.subr.mxu0 0.0
    %1422 = vmatpush1.msra.mxu0 0.0
    %1423 = vmatprep.subr.mxu0 0.0
    %1424 = vmatpush1.msra.mxu0 0.0
    %1425 = vmatprep.subr.mxu0 0.0
    %1426 = vmatpush1.msra.mxu0 0.0
    %1427 = vmatprep.subr.mxu0 0.0
    %1428 = vmatpush1.msra.mxu0 0.0
    %1429 = vmatprep.subr.mxu0 0.0
    %1430 = vmatpush1.msra.mxu0 0.0
    %1431 = vmatprep.subr.mxu0 0.0
    %1432 = vmatpush1.msra.mxu0 0.0
    %1433 = vmatprep.subr.mxu0 0.0
    %1434 = vmatpush1.msra.mxu0 0.0
    %1435 = vmatprep.subr.mxu0 0.0
    %1436 = vmatpush1.msra.mxu0 0.0
    %1437 = vmatprep.subr.mxu0 0.0
    %1438 = vmatpush1.msra.mxu0 0.0
    %1439 = vmatprep.subr.mxu0 0.0
    %1440 = vmatpush1.msra.mxu0 %v1415
    %1441 = vmatprep.subr.mxu0 0.0
    %1442 = vmatpush1.msra.mxu0 %v1403
    %1443 = vmatprep.subr.mxu0 0.0
    %1444 = vmatpush1.msra.mxu0 %v1402
    %1445 = vmatprep.subr.mxu0 0.0
    %1446 = vmatpush1.msra.mxu0 %v1401
    %1447 = vmatprep.subr.mxu0 0.0
    %1448 = vmatpush1.msra.mxu0 %v1400
    %1449 = vmatprep.subr.mxu0 0.0
    %1450 = vmatpush2.msra.mxu0 0.0
    %1451 = vmatprep.subr.mxu0 0.0
    %1452 = vmatpush2.msra.mxu0 0.0
    %1453 = vmatprep.subr.mxu0 0.0
    %1454 = vmatpush2.msra.mxu0 0.0
    %1455 = vmatprep.subr.mxu0 0.0
    %1456 = vmatpush2.msra.mxu0 0.0
    %1457 = vmatprep.subr.mxu0 0.0
    %1458 = vmatpush2.msra.mxu0 0.0
    %1459 = vmatprep.subr.mxu0 0.0
    %1460 = vmatpush2.msra.mxu0 0.0
    %1461 = vmatprep.subr.mxu0 0.0
    %1462 = vmatpush2.msra.mxu0 0.0
    %1463 = vmatprep.subr.mxu0 0.0
    %1464 = vmatpush2.msra.mxu0 0.0
    %1465 = vmatprep.subr.mxu0 0.0
    %1466 = vmatpush2.msra.mxu0 0.0
    %1467 = vmatprep.subr.mxu0 0.0
    %1468 = vmatpush2.msra.mxu0 0.0
    %1469 = vmatprep.subr.mxu0 0.0
    %1470 = vmatpush2.msra.mxu0 0.0
    %1471 = vmatprep.subr.mxu0 0.0
    %1472 = vmatpush2.msra.mxu0 0.0
    %1473 = vmatprep.subr.mxu0 0.0
    %1474 = vmatpush2.msra.mxu0 0.0
    %1475 = vmatprep.subr.mxu0 0.0
    %1476 = vmatpush2.msra.mxu0 0.0
    %1477 = vmatprep.subr.mxu0 0.0
    %1478 = vmatpush2.msra.mxu0 0.0
    %1479 = vmatprep.subr.mxu0 0.0
    %1480 = vmatpush2.msra.mxu0 0.0
    %1481 = vmatprep.mubr.f32.mxu0 0.0
    %1482 = vmatmul.mubr.f32.gmra.mxu0 %v1412
    %v1483 = vpop.f32.mrf.mxu0
    %v1484 = vadd.f32 %v1409, %v1483
    %v1485 = vpop.f32.mrf.mxu0
    %1486 = vdwg.mxu0
    %v1487 = vmax.f32 %v1484, 0.0
    %v1488 = vsel %vm180, %v1487, 0.0
    %v1489 = vrot.slane %v1488, 4
    %v1490 = vadd.f32 %v1488, %v1489
    %v1491 = vrot.slane %v1490, 2
    %v1492 = vadd.f32 %v1490, %v1491
    %v1493 = vrot.slane %v1492, 1
    %v1494 = vadd.f32 %v1492, %v1493
    %v1495 = vrcp.pop 8.0
    %v1496 = vmul.f32 %v1494, %v1495
    %v1497 = vsub.f32 %v1487, %v1496
    %v1498 = vmul.f32 %v1497, %v1497
    %v1499 = vsel %vm180, %v1498, 0.0
    %v1500 = vrot.slane %v1499, 4
    %v1501 = vadd.f32 %v1499, %v1500
    %v1502 = vrot.slane %v1501, 2
    %v1503 = vadd.f32 %v1501, %v1502
    %v1504 = vrot.slane %v1503, 1
    %v1505 = vadd.f32 %v1503, %v1504
    %v1506 = vmul.f32 %v1505, %v1495
    %v1507 = vadd.f32 %v1506, 1e-05
    %v1508 = vrsqrt.pop %v1507
    %v1509 = vmul.f32 %v1497, %v1508
    %v1510 = vld [vmem:[#allocation6 + $0x98] sm:$0x1]
    %v1511 = vlaneseq
    %v1512 = vshrl.u32 %v1511, 7
    %v1513 = vsub.s32 0, %v1512
    %v1514 = vrot.slane %v1510, %v1513
    %v1515 = vmul.f32 %v1509, %v1514
    %v1516 = vld [vmem:[#allocation6 + $0xa0] sm:$0x1]
    %v1517 = vlaneseq
    %v1518 = vshrl.u32 %v1517, 7
    %v1519 = vsub.s32 0, %v1518
    %v1520 = vrot.slane %v1516, %v1519
    %v1521 = vadd.f32 %v1515, %v1520
    %v1522 = vmax.f32 %v1521, 0.0
    %v1523 = vld [vmem:[#allocation6 + $0xa8] sm:$0xff]
    %v1524 = vld [vmem:[#allocation6 + $0xb0] sm:$0xff]
    %v1525 = vld [vmem:[#allocation6 + $0xb8] sm:$0xff]
    %v1526 = vld [vmem:[#allocation6 + $0xc0] sm:$0xff]
    %v1527 = vld [vmem:[#allocation6 + $0xc8] sm:$0x1]
    %v1528 = vlaneseq
    %v1529 = vshrl.u32 %v1528, 7
    %v1530 = vsub.s32 0, %v1529
    %v1531 = vrot.slane %v1527, %v1530
    %v1533 = vsel %vm180, %v1522, 0
    %1535 = vmatprep.subr.mxu0 0.0
    %1536 = vmatpush1.msra.mxu0 0.0
    %1537 = vmatprep.subr.mxu0 0.0
    %1538 = vmatpush1.msra.mxu0 0.0
    %1539 = vmatprep.subr.mxu0 0.0
    %1540 = vmatpush1.msra.mxu0 0.0
    %1541 = vmatprep.subr.mxu0 0.0
    %1542 = vmatpush1.msra.mxu0 0.0
    %1543 = vmatprep.subr.mxu0 0.0
    %1544 = vmatpush1.msra.mxu0 0.0
    %1545 = vmatprep.subr.mxu0 0.0
    %1546 = vmatpush1.msra.mxu0 0.0
    %1547 = vmatprep.subr.mxu0 0.0
    %1548 = vmatpush1.msra.mxu0 0.0
    %1549 = vmatprep.subr.mxu0 0.0
    %1550 = vmatpush1.msra.mxu0 0.0
    %1551 = vmatprep.subr.mxu0 0.0
    %1552 = vmatpush1.msra.mxu0 0.0
    %1553 = vmatprep.subr.mxu0 0.0
    %1554 = vmatpush1.msra.mxu0 0.0
    %1555 = vmatprep.subr.mxu0 0.0
    %1556 = vmatpush1.msra.mxu0 0.0
    %1557 = vmatprep.subr.mxu0 0.0
    %1558 = vmatpush1.msra.mxu0 0.0
    %1559 = vmatprep.subr.mxu0 0.0
    %1560 = vmatpush1.msra.mxu0 %v1526
    %1561 = vmatprep.subr.mxu0 0.0
    %1562 = vmatpush1.msra.mxu0 %v1525
    %1563 = vmatprep.subr.mxu0 0.0
    %1564 = vmatpush1.msra.mxu0 %v1524
    %1565 = vmatprep.subr.mxu0 0.0
    %1566 = vmatpush1.msra.mxu0 %v1523
    %1567 = vmatprep.subr.mxu0 0.0
    %1568 = vmatpush2.msra.mxu0 0.0
    %1569 = vmatprep.subr.mxu0 0.0
    %1570 = vmatpush2.msra.mxu0 0.0
    %1571 = vmatprep.subr.mxu0 0.0
    %1572 = vmatpush2.msra.mxu0 0.0
    %1573 = vmatprep.subr.mxu0 0.0
    %1574 = vmatpush2.msra.mxu0 0.0
    %1575 = vmatprep.subr.mxu0 0.0
    %1576 = vmatpush2.msra.mxu0 0.0
    %1577 = vmatprep.subr.mxu0 0.0
    %1578 = vmatpush2.msra.mxu0 0.0
    %1579 = vmatprep.subr.mxu0 0.0
    %1580 = vmatpush2.msra.mxu0 0.0
    %1581 = vmatprep.subr.mxu0 0.0
    %1582 = vmatpush2.msra.mxu0 0.0
    %1583 = vmatprep.subr.mxu0 0.0
    %1584 = vmatpush2.msra.mxu0 0.0
    %1585 = vmatprep.subr.mxu0 0.0
    %1586 = vmatpush2.msra.mxu0 0.0
    %1587 = vmatprep.subr.mxu0 0.0
    %1588 = vmatpush2.msra.mxu0 0.0
    %1589 = vmatprep.subr.mxu0 0.0
    %1590 = vmatpush2.msra.mxu0 0.0
    %1591 = vmatprep.subr.mxu0 0.0
    %1592 = vmatpush2.msra.mxu0 0.0
    %1593 = vmatprep.subr.mxu0 0.0
    %1594 = vmatpush2.msra.mxu0 0.0
    %1595 = vmatprep.subr.mxu0 0.0
    %1596 = vmatpush2.msra.mxu0 0.0
    %1597 = vmatprep.subr.mxu0 0.0
    %1598 = vmatpush2.msra.mxu0 0.0
    %1599 = vmatprep.mubr.f32.mxu0 0.0
    %1600 = vmatmul.mubr.f32.gmra.mxu0 %v1533
    %v1601 = vpop.f32.mrf.mxu0
    %v1602 = vadd.f32 %v1531, %v1601
    %v1603 = vpop.f32.mrf.mxu0
    %1604 = vdwg.mxu0
    %1605 = vst.msk [vmem:[%s4] sm:$0xff] %vm1061, %v1602
    // Predicated region
    $region30: #{tpu_custom_call.1} parent=1 // pred_check
      _
    $region31: #{tpu_custom_call.1} parent=1 // pred_check_branch
      %1607 = sbr.rel (0) target = $region33
    $region32: #{tpu_custom_call.1} parent=1 // pred_region
      _
    $region33: #{tpu_custom_call.1} parent=1 // pred_fallthru
      _
    // Predicated region
    $region34: #{tpu_custom_call.1} parent=1 // pred_check
      _
    $region35: #{tpu_custom_call.1} parent=1 // pred_check_branch
      %1609 = sbr.rel (0) target = $region37
    $region36: #{tpu_custom_call.1} parent=1 // pred_region
      _
    $region37: #{tpu_custom_call.1} parent=1 // pred_fallthru
      _
    %1610 = vsyncpa [#allocation3], 1
    %1611 = vsyncpa [#allocation5], 1

</llo_original>
